<compile_context>
chip_gen: v5e
topology: v5e:2x2
jax: 0.10.0
libtpu: 0.0.40
codegen_flags: <defaults>
</compile_context>

<pallas_src>
import jax
import jax.numpy as jnp
from jax import lax
from jax.experimental import pallas as pl
from jax.experimental.pallas import tpu as pltpu

VMEM = pltpu.MemorySpace.VMEM


# ----------------------------- Pallas kernels ------------------------------

def _conv_bn_relu_pool_kernel(x_ref, w_ref, b_ref, o_ref, pool_ref):
    # x_ref:    (1, H+2, W+2, Cin)  padded NHWC image for one batch item
    # w_ref:    (Cout, 9*Cin)       BN-folded conv weights (tap-major layout)
    # b_ref:    (Cout, 1)           BN-folded bias
    # o_ref:    (1, Cout, H*W)      NCHW-flat post-ReLU feature map
    # pool_ref: (1, Cout, 1)        per-sample global-average-pool (f32)
    _, Hp, Wp, Cin = x_ref.shape
    H, W = Hp - 2, Wp - 2

    xp = x_ref[0]                                            # (Hp, Wp, Cin) in VMEM
    # In-kernel im2col: 9 shifted views of the resident padded tile, stacked
    # along the channel axis, then a leading-dim collapse (lane dim unchanged).
    taps = [xp[kh:kh + H, kw:kw + W, :] for kh in range(3) for kw in range(3)]
    patches = jnp.concatenate(taps, axis=-1).reshape(H * W, 9 * Cin)  # (H*W, 9*Cin)

    # Single MXU contraction, K = 9*Cin, result directly in (Cout, H*W) = NCHW
    # orientation (both operands contract on their minor dim, like qk^T).
    # TODO(synk): at ResNet block sizes tile Cout into >=128-wide groups per dot
    # to keep MXU utilization up once the memory fixes make this compute-bound.
    acc = lax.dot_general(
        w_ref[...], patches,
        dimension_numbers=(((1,), (1,)), ((), ())),
        preferred_element_type=jnp.float32)                  # (Cout, H*W), f32

    y = jnp.maximum(acc + b_ref[...], 0.0)                   # fused bias + ReLU (f32)
    o_ref[0] = y.astype(o_ref.dtype)                         # lane-dense NCHW store

    # Fused global-average-pool partial result: computed from the in-vreg tile,
    # so stage 2 never re-reads the feature map from HBM.
    pool_ref[0] = (jnp.sum(y, axis=1, keepdims=True)
                   * (1.0 / (H * W))).astype(pool_ref.dtype)


def _fc_kernel(x_ref, w_ref, b_ref, o_ref):
    # x_ref: (N, C) pooled features, w_ref: (C, O), b_ref: (1, O), o_ref: (N, O)
    logits = jnp.dot(x_ref[...], w_ref[...], preferred_element_type=jnp.float32)
    o_ref[...] = (logits + b_ref[...]).astype(o_ref.dtype)


# ------------------------------- wrappers ----------------------------------

def conv3x3_bn_relu_pool(x_nchw, w_hwio, conv_b, gamma, beta, mean, var, eps=1e-5):
    """Fused 3x3 conv (stride 1, pad 1) + eval BatchNorm + ReLU, plus the
    global-average-pool partial sums as a second output.

    Returns (feature_map NCHW, pooled (N, Cout, 1, 1))."""
    N, Cin, H, W = x_nchw.shape
    Cout = w_hwio.shape[-1]
    HW = H * W

    # --- fold BN (eval mode) into the conv weights / bias at trace time ------
    inv = gamma / jnp.sqrt(var + eps)                        # (Cout,)
    w_fold_t = (w_hwio * inv).reshape(9 * Cin, Cout).T       # (Cout, 9*Cin), tap-major
    b_fold = ((conv_b - mean) * inv + beta).reshape(Cout, 1)

    # --- layout prep (cheap XLA glue): NCHW -> padded NHWC only --------------
    # (The 9x im2col expansion and the output transpose of the old version are
    #  gone; patch formation and NCHW orientation now happen inside the kernel.)
    xp = jnp.pad(jnp.transpose(x_nchw, (0, 2, 3, 1)),
                 ((0, 0), (1, 1), (1, 1), (0, 0)))           # (N, H+2, W+2, Cin)

    fmap_flat, pooled = pl.pallas_call(
        _conv_bn_relu_pool_kernel,
        out_shape=(
            jax.ShapeDtypeStruct((N, Cout, HW), x_nchw.dtype),   # NCHW-flat relu map
            jax.ShapeDtypeStruct((N, Cout, 1), jnp.float32),     # pooled means
        ),
        grid=(N,),
        in_specs=[
            pl.BlockSpec((1, H + 2, W + 2, Cin), lambda n: (n, 0, 0, 0)),  # pipelined
            pl.BlockSpec((Cout, 9 * Cin), lambda n: (0, 0)),   # folded weights (resident)
            pl.BlockSpec((Cout, 1), lambda n: (0, 0)),         # folded bias (resident)
        ],
        out_specs=(
            pl.BlockSpec((1, Cout, HW), lambda n: (n, 0, 0)),
            pl.BlockSpec((1, Cout, 1), lambda n: (n, 0, 0)),
        ),
        compiler_params=pltpu.CompilerParams(
            dimension_semantics=("parallel",)),                # batch axis -> megacore
    )(xp, w_fold_t, b_fold)

    # Free metadata reshapes (no data movement).
    return fmap_flat.reshape(N, Cout, H, W), pooled.reshape(N, Cout, 1, 1)


def linear_fc(x_2d, fc_w, fc_b):
    """Linear layer with PyTorch (out, in) weight on already-pooled features."""
    N, _ = x_2d.shape
    O = fc_w.shape[0]
    return pl.pallas_call(
        _fc_kernel,
        out_shape=jax.ShapeDtypeStruct((N, O), x_2d.dtype),
        in_specs=[pl.BlockSpec(memory_space=VMEM)] * 3,
        out_specs=pl.BlockSpec(memory_space=VMEM),
    )(x_2d, fc_w.T, fc_b.reshape(1, O))


# --------------------------- FeatureExtractor -------------------------------

class FeatureExtractor:
    """JAX/Pallas port of the PyTorch FeatureExtractor forward loop."""

    def __init__(self, submodule, extracted_layers):
        self.submodule = submodule            # ordered dict: name -> callable
        self.extracted_layers = extracted_layers

    def __call__(self, x):
        outputs = []
        for name, module in self.submodule.items():
            if name == 'fc':
                x = x.reshape(x.shape[0], -1)   # x.view(x.size(0), -1)
            x = module(x)
            if name in self.extracted_layers:
                outputs.append(x)
        return outputs


# --------------------------------- main -------------------------------------

if __name__ == "__main__":
    key = jax.random.PRNGKey(0)
    ks = jax.random.split(key, 9)

    N, Cin, H, W = 2, 4, 16, 16
    Cout, num_classes = 8, 10

    x = jax.random.normal(ks[0], (N, Cin, H, W), jnp.float32)   # NCHW like PyTorch

    # deterministic synthetic parameters (no checkpoint load)
    conv_w = 0.1 * jax.random.normal(ks[1], (3, 3, Cin, Cout), jnp.float32)  # HWIO
    conv_b = 0.1 * jax.random.normal(ks[2], (Cout,), jnp.float32)
    bn_gamma = 1.0 + 0.1 * jax.random.normal(ks[3], (Cout,), jnp.float32)
    bn_beta = 0.1 * jax.random.normal(ks[4], (Cout,), jnp.float32)
    bn_mean = 0.1 * jax.random.normal(ks[5], (Cout,), jnp.float32)
    bn_var = 0.5 + jnp.abs(jax.random.normal(ks[6], (Cout,), jnp.float32))
    fc_w = 0.1 * jax.random.normal(ks[7], (num_classes, Cout), jnp.float32)  # (out,in)
    fc_b = 0.1 * jax.random.normal(ks[8], (num_classes,), jnp.float32)

    # synthetic ResNet-stem-like submodule (ordered, like submodule._modules).
    # conv1+bn1+relu (+ avgpool partial sums) run in kernel 1; fc is kernel 2.
    # Intermediate names pass values through unchanged so the tensors observed
    # at the extraction points ('relu', 'fc') match the unfused PyTorch module.
    state = {}

    def conv1_fn(t):
        fmap, pooled = conv3x3_bn_relu_pool(t, conv_w, conv_b,
                                            bn_gamma, bn_beta, bn_mean, bn_var)
        state['pooled'] = pooled          # avgpool result, produced inside kernel 1
        return fmap

    submodule = {
        'conv1':   conv1_fn,                      # conv+bn+relu fused (+ pool partials)
        'bn1':     lambda t: t,                   # folded into 'conv1'
        'relu':    lambda t: t,                   # folded into 'conv1' (extraction point)
        'avgpool': lambda t: state['pooled'],     # (N, Cout, 1, 1), computed in kernel 1
        'fc':      lambda t: linear_fc(t, fc_w, fc_b),
    }
    extracted_layers = ['relu', 'fc']

    extractor = FeatureExtractor(submodule, extracted_layers)
    run = jax.jit(lambda inp: extractor(inp))
    outputs = jax.block_until_ready(run(x))

    # lightweight pure-JAX reference check
    x_nhwc = jnp.transpose(x, (0, 2, 3, 1))
    y_ref = lax.conv_general_dilated(
        x_nhwc, conv_w, (1, 1), 'SAME',
        dimension_numbers=('NHWC', 'HWIO', 'NHWC')) + conv_b
    y_ref = (y_ref - bn_mean) / jnp.sqrt(bn_var + 1e-5) * bn_gamma + bn_beta
    relu_ref = jnp.maximum(y_ref, 0.0)
    pooled_ref = jnp.mean(relu_ref, axis=(1, 2))
    fc_ref = pooled_ref @ fc_w.T + fc_b

    assert outputs[0].shape == (N, Cout, H, W)
    assert outputs[1].shape == (N, num_classes)
    assert jnp.allclose(outputs[0], jnp.transpose(relu_ref, (0, 3, 1, 2)),
                        atol=1e-4, rtol=1e-4)
    assert jnp.allclose(outputs[1], fc_ref, atol=1e-4, rtol=1e-4)

    print("KERNEL_OK")
</pallas_src>

<mosaic_0001>
module attributes {stable_mosaic.version = 11 : i64} {
  func.func @_conv_bn_relu_pool_kernel(%arg0: i32, %arg1: memref<1x18x18x4xf32, #tpu.memory_space<vmem>>, %arg2: memref<8x36xf32, #tpu.memory_space<vmem>>, %arg3: memref<8x1xf32, #tpu.memory_space<vmem>>, %arg4: memref<1x8x256xf32, #tpu.memory_space<vmem>>, %arg5: memref<1x8x1xf32, #tpu.memory_space<vmem>>) attributes {dimension_semantics = [#tpu.dimension_semantics<parallel>], iteration_bounds = array<i64: 2>, scalar_prefetch = 0 : i64, scratch_operands = 0 : i64, tpu.core_type = #tpu.core_type<tc>, window_params = [{transform_indices = @transform_0, window_bounds = array<i64: 1, 18, 18, 4>}, {pipeline_mode = #tpu.pipeline_mode<synchronous>, transform_indices = @transform_1, window_bounds = array<i64: 8, 36>}, {pipeline_mode = #tpu.pipeline_mode<synchronous>, transform_indices = @transform_2, window_bounds = array<i64: 8, 1>}, {transform_indices = @transform_3, window_bounds = array<i64: 1, 8, 256>}, {transform_indices = @transform_4, window_bounds = array<i64: 1, 8, 1>}]} {
    %c0 = arith.constant 0 : index
    %c0_0 = arith.constant 0 : index
    %c0_1 = arith.constant 0 : index
    %c0_2 = arith.constant 0 : index
    %0 = vector.load %arg1[%c0, %c0_0, %c0_1, %c0_2] : memref<1x18x18x4xf32, #tpu.memory_space<vmem>>, vector<1x18x18x4xf32>
    %1 = vector.shape_cast %0 : vector<1x18x18x4xf32> to vector<18x18x4xf32>
    %2 = vector.extract_strided_slice %1 {offsets = [0, 0, 0], sizes = [16, 16, 4], strides = [1, 1, 1]} : vector<18x18x4xf32> to vector<16x16x4xf32>
    %3 = vector.extract_strided_slice %1 {offsets = [0, 1, 0], sizes = [16, 16, 4], strides = [1, 1, 1]} : vector<18x18x4xf32> to vector<16x16x4xf32>
    %4 = vector.extract_strided_slice %1 {offsets = [0, 2, 0], sizes = [16, 16, 4], strides = [1, 1, 1]} : vector<18x18x4xf32> to vector<16x16x4xf32>
    %5 = vector.extract_strided_slice %1 {offsets = [1, 0, 0], sizes = [16, 16, 4], strides = [1, 1, 1]} : vector<18x18x4xf32> to vector<16x16x4xf32>
    %6 = vector.extract_strided_slice %1 {offsets = [1, 1, 0], sizes = [16, 16, 4], strides = [1, 1, 1]} : vector<18x18x4xf32> to vector<16x16x4xf32>
    %7 = vector.extract_strided_slice %1 {offsets = [1, 2, 0], sizes = [16, 16, 4], strides = [1, 1, 1]} : vector<18x18x4xf32> to vector<16x16x4xf32>
    %8 = vector.extract_strided_slice %1 {offsets = [2, 0, 0], sizes = [16, 16, 4], strides = [1, 1, 1]} : vector<18x18x4xf32> to vector<16x16x4xf32>
    %9 = vector.extract_strided_slice %1 {offsets = [2, 1, 0], sizes = [16, 16, 4], strides = [1, 1, 1]} : vector<18x18x4xf32> to vector<16x16x4xf32>
    %10 = vector.extract_strided_slice %1 {offsets = [2, 2, 0], sizes = [16, 16, 4], strides = [1, 1, 1]} : vector<18x18x4xf32> to vector<16x16x4xf32>
    %11 = tpu.concatenate %2, %3, %4, %5, %6, %7, %8, %9, %10 in 2 : vector<16x16x4xf32>, vector<16x16x4xf32>, vector<16x16x4xf32>, vector<16x16x4xf32>, vector<16x16x4xf32>, vector<16x16x4xf32>, vector<16x16x4xf32>, vector<16x16x4xf32>, vector<16x16x4xf32> -> vector<16x16x36xf32>
    %12 = vector.shape_cast %11 : vector<16x16x36xf32> to vector<256x36xf32>
    %c0_3 = arith.constant 0 : index
    %c0_4 = arith.constant 0 : index
    %13 = vector.load %arg2[%c0_3, %c0_4] : memref<8x36xf32, #tpu.memory_space<vmem>>, vector<8x36xf32>
    %cst = arith.constant dense<0.000000e+00> : vector<8x256xf32>
    %14 = tpu.matmul %13, %12, %cst {dimension_numbers = #tpu.dot_dimension_numbers<[1], [1], [0], [0], [0, 0, 1, 0], [], []>} : vector<8x36xf32>, vector<256x36xf32>, vector<8x256xf32> -> vector<8x256xf32>
    %c0_5 = arith.constant 0 : index
    %c0_6 = arith.constant 0 : index
    %15 = vector.load %arg3[%c0_5, %c0_6] : memref<8x1xf32, #tpu.memory_space<vmem>>, vector<8x1xf32>
    %16 = vector.broadcast %15 : vector<8x1xf32> to vector<8x256xf32>
    %17 = arith.addf %14, %16 : vector<8x256xf32>
    %cst_7 = arith.constant 0.000000e+00 : f32
    %18 = vector.broadcast %cst_7 : f32 to vector<8x256xf32>
    %19 = arith.maximumf %17, %18 : vector<8x256xf32>
    %c0_8 = arith.constant 0 : index
    %c0_9 = arith.constant 0 : index
    %c0_10 = arith.constant 0 : index
    %20 = vector.load %arg4[%c0_8, %c0_9, %c0_10] : memref<1x8x256xf32, #tpu.memory_space<vmem>>, vector<1x8x256xf32>
    %21 = vector.shape_cast %20 : vector<1x8x256xf32> to vector<8x256xf32>
    %22 = vector.shape_cast %19 : vector<8x256xf32> to vector<1x8x256xf32>
    tpu.vector_store %arg4[%c0_8, %c0_9, %c0_10], %22 {strides = array<i32>} : memref<1x8x256xf32, #tpu.memory_space<vmem>>, vector<1x8x256xf32>,
    %cst_11 = arith.constant dense<0.000000e+00> : vector<8xf32>
    %23 = vector.multi_reduction <add>, %19, %cst_11 [1] : vector<8x256xf32> to vector<8xf32>
    %24 = vector.shape_cast %23 : vector<8xf32> to vector<8x1xf32>
    %cst_12 = arith.constant 3.906250e-03 : f32
    %25 = vector.broadcast %cst_12 : f32 to vector<8x1xf32>
    %26 = arith.mulf %24, %25 : vector<8x1xf32>
    %c0_13 = arith.constant 0 : index
    %c0_14 = arith.constant 0 : index
    %c0_15 = arith.constant 0 : index
    %27 = vector.load %arg5[%c0_13, %c0_14, %c0_15] : memref<1x8x1xf32, #tpu.memory_space<vmem>>, vector<1x8x1xf32>
    %28 = vector.shape_cast %27 : vector<1x8x1xf32> to vector<8x1xf32>
    %29 = vector.shape_cast %26 : vector<8x1xf32> to vector<1x8x1xf32>
    tpu.vector_store %arg5[%c0_13, %c0_14, %c0_15], %29 {strides = array<i32>} : memref<1x8x1xf32, #tpu.memory_space<vmem>>, vector<1x8x1xf32>,
    return
  }
  func.func @transform_0(%arg0: i32) -> (i32, i32, i32, i32) {
    %c0_i32 = arith.constant 0 : i32
    %c0_i32_0 = arith.constant 0 : i32
    %c0_i32_1 = arith.constant 0 : i32
    %c0_i32_2 = arith.constant 0 : i32
    return %arg0, %c0_i32, %c0_i32_0, %c0_i32_1 : i32, i32, i32, i32
  }
  func.func @transform_1(%arg0: i32) -> (i32, i32) {
    %c0_i32 = arith.constant 0 : i32
    %c0_i32_0 = arith.constant 0 : i32
    %c0_i32_1 = arith.constant 0 : i32
    return %c0_i32, %c0_i32_0 : i32, i32
  }
  func.func @transform_2(%arg0: i32) -> (i32, i32) {
    %c0_i32 = arith.constant 0 : i32
    %c0_i32_0 = arith.constant 0 : i32
    %c0_i32_1 = arith.constant 0 : i32
    return %c0_i32, %c0_i32_0 : i32, i32
  }
  func.func @transform_3(%arg0: i32) -> (i32, i32, i32) {
    %c0_i32 = arith.constant 0 : i32
    %c0_i32_0 = arith.constant 0 : i32
    %c0_i32_1 = arith.constant 0 : i32
    return %arg0, %c0_i32, %c0_i32_0 : i32, i32, i32
  }
  func.func @transform_4(%arg0: i32) -> (i32, i32, i32) {
    %c0_i32 = arith.constant 0 : i32
    %c0_i32_0 = arith.constant 0 : i32
    %c0_i32_1 = arith.constant 0 : i32
    return %arg0, %c0_i32, %c0_i32_0 : i32, i32, i32
  }
}

module attributes {stable_mosaic.version = 11 : i64} {
  func.func @_fc_kernel(%arg0: memref<2x8xf32, #tpu.memory_space<vmem>>, %arg1: memref<8x10xf32, #tpu.memory_space<vmem>>, %arg2: memref<1x10xf32, #tpu.memory_space<vmem>>, %arg3: memref<2x10xf32, #tpu.memory_space<vmem>>) attributes {dimension_semantics = [], scalar_prefetch = 0 : i64, scratch_operands = 0 : i64, tpu.core_type = #tpu.core_type<tc>} {
    %c0 = arith.constant 0 : index
    %c0_0 = arith.constant 0 : index
    %0 = vector.load %arg0[%c0, %c0_0] : memref<2x8xf32, #tpu.memory_space<vmem>>, vector<2x8xf32>
    %c0_1 = arith.constant 0 : index
    %c0_2 = arith.constant 0 : index
    %1 = vector.load %arg1[%c0_1, %c0_2] : memref<8x10xf32, #tpu.memory_space<vmem>>, vector<8x10xf32>
    %cst = arith.constant dense<0.000000e+00> : vector<2x10xf32>
    %2 = tpu.matmul %0, %1, %cst {dimension_numbers = #tpu.dot_dimension_numbers<[1], [0], [0], [1], [0, 0, 1, 1], [], []>} : vector<2x8xf32>, vector<8x10xf32>, vector<2x10xf32> -> vector<2x10xf32>
    %c0_3 = arith.constant 0 : index
    %c0_4 = arith.constant 0 : index
    %3 = vector.load %arg2[%c0_3, %c0_4] : memref<1x10xf32, #tpu.memory_space<vmem>>, vector<1x10xf32>
    %4 = vector.broadcast %3 : vector<1x10xf32> to vector<2x10xf32>
    %5 = arith.addf %2, %4 : vector<2x10xf32>
    %c0_5 = arith.constant 0 : index
    %c0_6 = arith.constant 0 : index
    %6 = vector.load %arg3[%c0_5, %c0_6] : memref<2x10xf32, #tpu.memory_space<vmem>>, vector<2x10xf32>
    tpu.vector_store %arg3[%c0_5, %c0_6], %5 {strides = array<i32>} : memref<2x10xf32, #tpu.memory_space<vmem>>, vector<2x10xf32>,
    return
  }
}

</mosaic_0001>

<llo_original>
// kernel: _lambda_.3
$region0: #{_lambda_.3}
  #allocation0 [shape = 'u32[]', space=smem, size = 0x4, offset = 0x4, fixed_abs, tag = 'smem constant byte address 0x4 - core index']
  #allocation1 [shape = 'u32[72,128]{1,0:T(1,128)}', space=vmem, size = 0x9000, scoped, tag = 'internal scratch']
  %s0 = inlined_call_operand.vmem [shape: f32[2,8], index: 0, kind: input, shape index: {}]
  %s1 = inlined_call_operand.vmem [shape: f32[8,10], index: 1, kind: input, shape index: {}]
  %s2 = inlined_call_operand.vmem [shape: f32[1,10], index: 2, kind: input, shape index: {}]
  %s3 = inlined_call_operand.hbm [shape: f32[2,10], index: 3, kind: output, shape index: {}]
  %s4 = sld [smem:[#allocation0]]
  $region22: #{_lambda_.3} parent=0
    _
  %s6 = ssub.s32 1, %s4
  %s7 = scalar_select 0, %s6, %s4
  $region1: #{_lambda_.3} parent=0
    #allocation2 [shape = 'u8[1024]{0}', space=vmem, size = 0x400, scoped, tag = 'output window, operand 0, single buffered']
    #allocation3 [shape = 's32[1]{0}', space=sflag, size = 0x4, scoped, tag = 'scoped memory for _lambda_.3']
    %8 = vsyncpa [#allocation3], 0
    // Predicated region
    $region2: #{_lambda_.3} parent=1 // pred_check
      _
    $region3: #{_lambda_.3} parent=1 // pred_check_branch
      %10 = sbr.rel (0) target = $region5
    $region4: #{_lambda_.3} parent=1 // pred_region
      _
    $region5: #{_lambda_.3} parent=1 // pred_fallthru
      _
    // Predicated region
    $region6: #{_lambda_.3} parent=1 // pred_check
      _
    $region7: #{_lambda_.3} parent=1 // pred_check_branch
      %12 = sbr.rel (0) target = $region9
    $region8: #{_lambda_.3} parent=1 // pred_region
      _
    $region9: #{_lambda_.3} parent=1 // pred_fallthru
      _
    // Predicated region
    $region10: #{_lambda_.3} parent=1 // pred_check
      _
    $region11: #{_lambda_.3} parent=1 // pred_check_branch
      %14 = sbr.rel (0) target = $region13
    $region12: #{_lambda_.3} parent=1 // pred_region
      _
    $region13: #{_lambda_.3} parent=1 // pred_fallthru
      _
    %v15 = vld [vmem:[%s0] sm:$0x3]
    %v16 = vld [vmem:[%s1] sm:$0xff]
    %v17 = vld [vmem:[%s2] sm:$0x1]
    %v19 = vperm.slane %v17, 0
    %vm21 = vcmask 64512
    %v23 = vsel %vm21, %v15, 0
    %25 = vmatpush.msra.mxu0 0.0
    %26 = vmatpush.msra.mxu0 0.0
    %27 = vmatpush.msra.mxu0 0.0
    %28 = vmatpush.msra.mxu0 0.0
    %29 = vmatpush.msra.mxu0 0.0
    %30 = vmatpush.msra.mxu0 0.0
    %31 = vmatpush.msra.mxu0 0.0
    %32 = vmatpush.msra.mxu0 0.0
    %33 = vmatpush.msra.mxu0 0.0
    %34 = vmatpush.msra.mxu0 0.0
    %35 = vmatpush.msra.mxu0 0.0
    %36 = vmatpush.msra.mxu0 0.0
    %37 = vmatpush.msra.mxu0 0.0
    %38 = vmatpush.msra.mxu0 0.0
    %39 = vmatpush.msra.mxu0 0.0
    %40 = vmatpush.msra.mxu0 %v16
    %41 = vmatmul.f32.gmra.mxu0 %v23
    %v42 = vpop.f32.mrf.mxu0
    %v43 = vadd.f32 %v19, %v42
    %44 = vdwg.mxu0
    %vm45 = vcmask 74752
    %46 = vst.msk [vmem:[#allocation2] sm:$0x3] %vm45, %v43
    // Predicated region
    $region14: #{_lambda_.3} parent=1 // pred_check
      _
    $region15: #{_lambda_.3} parent=1 // pred_check_branch
      %48 = sbr.rel (0) target = $region17
    $region16: #{_lambda_.3} parent=1 // pred_region
      %50 = vsyncadd [#allocation3], 0
      %s52 = sshll.u32 [#allocation2], 4
      %s53 = int_to_ptr.vmem [resolvable:$true] %s52
      %s54 = sshll.u32 %s3, 4
      %s55 = int_to_ptr.hbm [resolvable:$true] %s54
      %57 = dma.vmem_to_hbm [thread:$0]  %s53, 32, %s55, [#allocation3]
    $region17: #{_lambda_.3} parent=1 // pred_fallthru
      _
    // Predicated region
    $region18: #{_lambda_.3} parent=1 // pred_check
      _
    $region19: #{_lambda_.3} parent=1 // pred_check_branch
      %59 = sbr.rel (0) target = $region21
    $region20: #{_lambda_.3} parent=1 // pred_region
      %61 = dma.done [#allocation3], 32
    $region21: #{_lambda_.3} parent=1 // pred_fallthru
      _
    %62 = vsyncpa [#allocation3], 1

// kernel: _lambda_.2
$region0: #{_lambda_.2}
  #allocation0 [shape = 'u32[]', space=smem, size = 0x4, offset = 0x4, fixed_abs, tag = 'smem constant byte address 0x4 - core index']
  #allocation1 [shape = 'u32[72,128]{1,0:T(1,128)}', space=vmem, size = 0x9000, scoped, tag = 'internal scratch']
  %s0 = inlined_call_operand.vmem [shape: f32[2,18,18,4], index: 0, kind: input, shape index: {}]
  %s1 = inlined_call_operand.vmem [shape: f32[8,36], index: 1, kind: input, shape index: {}]
  %s2 = inlined_call_operand.vmem [shape: f32[8,1], index: 2, kind: input, shape index: {}]
  %s3 = inlined_call_operand.vmem [shape: f32[2,8,256], index: 3, kind: output, shape index: {0}]
  %s4 = inlined_call_operand.vmem [shape: f32[2,8,1], index: 4, kind: output, shape index: {1}]
  %5 = xla_tuple %s3, %s4
  %s6 = sld [smem:[#allocation0]]
  $region53: #{_lambda_.2} parent=0
    _
  %s8 = ssub.s32 1, %s6
  %s9 = scalar_select 0, %s8, %s6
  loop: start=0, step=1, limit=4
  $region2: #{_lambda_.2} parent=0 // loop_pre_header
    _
  $region3: #{_lambda_.2} parent=0 // loop_header
    %s11 = sphi 0, %s15
    %p12 = scmp.ge.s32.totalorder %s11, 4
    %s21 = sphi 0, %s23
    %s24 = sphi 0, %s21
    %s25 = sphi 0, %s24
    %s41 = sphi 0, %s25
    %s45 = sphi 0, %s45
    %s47 = sphi 0, %s45
    %s48 = sphi 0, %s47
    %s62 = sphi 0, %s48
    %s66 = sphi 0, %s66
    %s68 = sphi 0, %s66
    %s69 = sphi 0, %s68
    %s83 = sphi 0, %s69
    %s89 = sphi 0, %s91
    %s92 = sphi 0, %s89
    %s93 = sphi 0, %s92
    %s109 = sphi 0, %s93
    %s115 = sphi 0, %s117
    %s118 = sphi 0, %s115
    %s119 = sphi 0, %s118
    %s135 = sphi 0, %s119
  $region4: #{_lambda_.2} parent=0 // loop_header_branch
    %14 = sbr.rel (%p12) target = $region8
  $region5: #{_lambda_.2} parent=0 // loop_body
    %s16 = ssub.s32 %s11, 1
    %s17 = ssub.s32 %s11, 2
    %s18 = sadd.s32 %s11, 1
    %s19 = ssub.s32 %s11, %s18
    %p20 = scmp.eq.s32.totalorder %s19, 0
    %s22 = sadd.s32 %s21, 1
    %s23 = scalar_select %p20, %s21, %s22
    %p26 = pneg %p20
    %p27 = scmp.eq.s32.totalorder %s11, 1
    %p28 = por %p26, %p27
    %p29 = scmp.ne.s32.totalorder %s21, %s24
    %p30 = scmp.eq.s32.totalorder %s11, 0
    %p31 = por %p29, %p30
    %p32 = scmp.ne.s32.totalorder %s21, %s24
    %p33 = scmp.eq.s32.totalorder %s16, 1
    %p34 = por %p32, %p33
    %p35 = scmp.ne.s32.totalorder %s24, %s25
    %p36 = scmp.eq.s32.totalorder %s16, 0
    %p37 = por %p35, %p36
    %p38 = scmp.ne.s32.totalorder %s24, %s25
    %p39 = scmp.eq.s32.totalorder %s17, 1
    %p40 = por %p38, %p39
    %p42 = scmp.ne.s32.totalorder %s25, %s41
    %p43 = scmp.eq.s32.totalorder %s17, 0
    %p44 = por %p42, %p43
    %s46 = sadd.s32 %s45, 1
    %p49 = scmp.eq.s32.totalorder %s11, 1
    %p50 = scmp.ne.s32.totalorder %s45, %s47
    %p51 = scmp.eq.s32.totalorder %s11, 0
    %p52 = por %p50, %p51
    %p53 = scmp.ne.s32.totalorder %s45, %s47
    %p54 = scmp.eq.s32.totalorder %s16, 1
    %p55 = por %p53, %p54
    %p56 = scmp.ne.s32.totalorder %s47, %s48
    %p57 = scmp.eq.s32.totalorder %s16, 0
    %p58 = por %p56, %p57
    %p59 = scmp.ne.s32.totalorder %s47, %s48
    %p60 = scmp.eq.s32.totalorder %s17, 1
    %p61 = por %p59, %p60
    %p63 = scmp.ne.s32.totalorder %s48, %s62
    %p64 = scmp.eq.s32.totalorder %s17, 0
    %p65 = por %p63, %p64
    %s67 = sadd.s32 %s66, 1
    %p70 = scmp.eq.s32.totalorder %s11, 1
    %p71 = scmp.ne.s32.totalorder %s66, %s68
    %p72 = scmp.eq.s32.totalorder %s11, 0
    %p73 = por %p71, %p72
    %p74 = scmp.ne.s32.totalorder %s66, %s68
    %p75 = scmp.eq.s32.totalorder %s16, 1
    %p76 = por %p74, %p75
    %p77 = scmp.ne.s32.totalorder %s68, %s69
    %p78 = scmp.eq.s32.totalorder %s16, 0
    %p79 = por %p77, %p78
    %p80 = scmp.ne.s32.totalorder %s68, %s69
    %p81 = scmp.eq.s32.totalorder %s17, 1
    %p82 = por %p80, %p81
    %p84 = scmp.ne.s32.totalorder %s69, %s83
    %p85 = scmp.eq.s32.totalorder %s17, 0
    %p86 = por %p84, %p85
    %s87 = ssub.s32 %s11, %s18
    %p88 = scmp.eq.s32.totalorder %s87, 0
    %s90 = sadd.s32 %s89, 1
    %s91 = scalar_select %p88, %s89, %s90
    %p94 = pneg %p88
    %p95 = scmp.eq.s32.totalorder %s11, 1
    %p96 = por %p94, %p95
    %p97 = scmp.ne.s32.totalorder %s89, %s92
    %p98 = scmp.eq.s32.totalorder %s11, 0
    %p99 = por %p97, %p98
    %p100 = scmp.ne.s32.totalorder %s89, %s92
    %p101 = scmp.eq.s32.totalorder %s16, 1
    %p102 = por %p100, %p101
    %p103 = scmp.ne.s32.totalorder %s92, %s93
    %p104 = scmp.eq.s32.totalorder %s16, 0
    %p105 = por %p103, %p104
    %p106 = scmp.ne.s32.totalorder %s92, %s93
    %p107 = scmp.eq.s32.totalorder %s17, 1
    %p108 = por %p106, %p107
    %p110 = scmp.ne.s32.totalorder %s93, %s109
    %p111 = scmp.eq.s32.totalorder %s17, 0
    %p112 = por %p110, %p111
    %s113 = ssub.s32 %s11, %s18
    %p114 = scmp.eq.s32.totalorder %s113, 0
    %s116 = sadd.s32 %s115, 1
    %s117 = scalar_select %p114, %s115, %s116
    %p120 = pneg %p114
    %p121 = scmp.eq.s32.totalorder %s11, 1
    %p122 = por %p120, %p121
    %p123 = scmp.ne.s32.totalorder %s115, %s118
    %p124 = scmp.eq.s32.totalorder %s11, 0
    %p125 = por %p123, %p124
    %p126 = scmp.ne.s32.totalorder %s115, %s118
    %p127 = scmp.eq.s32.totalorder %s16, 1
    %p128 = por %p126, %p127
    %p129 = scmp.ne.s32.totalorder %s118, %s119
    %p130 = scmp.eq.s32.totalorder %s16, 0
    %p131 = por %p129, %p130
    %p132 = scmp.ne.s32.totalorder %s118, %s119
    %p133 = scmp.eq.s32.totalorder %s17, 1
    %p134 = por %p132, %p133
    %p136 = scmp.ne.s32.totalorder %s119, %s135
    %p137 = scmp.eq.s32.totalorder %s17, 0
    %p138 = por %p136, %p137
    %p139 = scmp.le.s32.totalorder 1, %s11
    %p140 = scmp.lt.s32.totalorder %s11, 3
    %p141 = pnand %p139, %p140
    %p142 = pneg %p141
    // Predicated region
    $region9: #{_lambda_.2} parent=5 // pred_check
      _
    $region10: #{_lambda_.2} parent=5 // pred_check_branch
      %144 = sbr.rel (%p141) target = $region12
    $region11: #{_lambda_.2} parent=5 // pred_region
      %s145 = ssub.s32 %s11, 1
      // Predicated region
      $region13: #{_lambda_.2} parent=11 // pred_check
        %p146 = pneg %p58
      $region14: #{_lambda_.2} parent=11 // pred_check_branch
        %148 = sbr.rel (%p146) target = $region16
      $region15: #{_lambda_.2} parent=11 // pred_region
        _
      $region16: #{_lambda_.2} parent=11 // pred_fallthru
        _
      // Predicated region
      $region17: #{_lambda_.2} parent=11 // pred_check
        %p149 = pneg %p79
      $region18: #{_lambda_.2} parent=11 // pred_check_branch
        %151 = sbr.rel (%p149) target = $region20
      $region19: #{_lambda_.2} parent=11 // pred_region
        _
      $region20: #{_lambda_.2} parent=11 // pred_fallthru
        _
    $region12: #{_lambda_.2} parent=5 // pred_fallthru
      _
    %p152 = scmp.lt.s32.totalorder %s11, 2
    // Predicated region
    $region21: #{_lambda_.2} parent=5 // pred_check
      %p153 = pneg %p152
    $region22: #{_lambda_.2} parent=5 // pred_check_branch
      %155 = sbr.rel (%p153) target = $region24
    $region23: #{_lambda_.2} parent=5 // pred_region
      // Predicated region
      $region25: #{_lambda_.2} parent=23 // pred_check
        %p156 = pneg %p31
      $region26: #{_lambda_.2} parent=23 // pred_check_branch
        %158 = sbr.rel (%p156) target = $region28
      $region27: #{_lambda_.2} parent=23 // pred_region
        %p159 = scmp.lt.s32.totalorder %s11, 1
        %s160 = scalar_select %p159, %s11, 1
        %s161 = smul.addr %s160, 54
        %s162 = smul.addr %s161, 8
        %s163 = scalar_lea.vmem %s0, %s162
      $region28: #{_lambda_.2} parent=23 // pred_fallthru
        _
    $region24: #{_lambda_.2} parent=5 // pred_fallthru
      _
    %p164 = scmp.le.s32.totalorder 1, %s11
    %p165 = scmp.lt.s32.totalorder %s11, 3
    %p166 = pnand %p164, %p165
    %p167 = pneg %p166
    // Predicated region
    $region29: #{_lambda_.2} parent=5 // pred_check
      _
    $region30: #{_lambda_.2} parent=5 // pred_check_branch
      %169 = sbr.rel (%p166) target = $region32
    $region31: #{_lambda_.2} parent=5 // pred_region
      %s170 = ssub.s32 %s11, 1
      %p171 = scmp.lt.s32.totalorder %s16, 1
      %s172 = scalar_select %p171, %s16, 1
      %s173 = smul.addr %s172, 54
      %s174 = smul.addr %s173, 8
      %s175 = scalar_lea.vmem %s0, %s174
      %p176 = pneg %p37
      %p177 = pneg %p34
      %p178 = pneg %p58
      %p179 = pneg %p55
      %p180 = pneg %p79
      %p181 = pneg %p76
      %p182 = pneg %p105
      %p183 = pneg %p102
      %p184 = scmp.lt.s32.totalorder %s16, 1
      %s185 = scalar_select %p184, %s16, 1
      %s186 = smul.addr %s185, 2
      %s187 = smul.addr %s186, 8
      %s188 = scalar_lea.vmem %s3, %s187
      %p189 = pneg %p131
      %p190 = pneg %p128
      %p191 = scmp.lt.s32.totalorder %s16, 1
      %s192 = scalar_select %p191, %s16, 1
      %s193 = smul.addr %s192, 8
      %s194 = scalar_lea.vmem %s4, %s193
      %p195 = scmp.lt.s32.totalorder %s16, 1
      %s196 = scalar_select %p195, %s16, 1
      %s197 = smul.addr %s196, 54
      %s198 = smul.addr %s197, 8
      %s199 = scalar_lea.vmem %s0, %s198
      %p200 = scmp.lt.s32.totalorder %s16, 1
      %s201 = scalar_select %p200, %s16, 1
      %s202 = smul.addr %s201, 2
      %s203 = smul.addr %s202, 8
      %s204 = scalar_lea.vmem %s3, %s203
      %p205 = scmp.lt.s32.totalorder %s16, 1
      %s206 = scalar_select %p205, %s16, 1
      %s207 = smul.addr %s206, 8
      %s208 = scalar_lea.vmem %s4, %s207
      %v209 = vld [vmem:[%s199] sm:$0xff]
      %v210 = vld [vmem:[%s199 + $0x8] sm:$0xff]
      %v211 = vld [vmem:[%s199 + $0x10] sm:$0x3]
      %v212 = vld [vmem:[%s199 + $0x18] sm:$0xff]
      %v213 = vld [vmem:[%s199 + $0x20] sm:$0xff]
      %v214 = vld [vmem:[%s199 + $0x28] sm:$0x3]
      %v215 = vld [vmem:[%s199 + $0x30] sm:$0xff]
      %v216 = vld [vmem:[%s199 + $0x38] sm:$0xff]
      %v217 = vld [vmem:[%s199 + $0x40] sm:$0x3]
      %v218 = vld [vmem:[%s199 + $0x48] sm:$0xff]
      %v219 = vld [vmem:[%s199 + $0x50] sm:$0xff]
      %v220 = vld [vmem:[%s199 + $0x58] sm:$0x3]
      %v221 = vld [vmem:[%s199 + $0x60] sm:$0xff]
      %v222 = vld [vmem:[%s199 + $0x68] sm:$0xff]
      %v223 = vld [vmem:[%s199 + $0x70] sm:$0x3]
      %v224 = vld [vmem:[%s199 + $0x78] sm:$0xff]
      %v225 = vld [vmem:[%s199 + $0x80] sm:$0xff]
      %v226 = vld [vmem:[%s199 + $0x88] sm:$0x3]
      %v227 = vld [vmem:[%s199 + $0x90] sm:$0xff]
      %v228 = vld [vmem:[%s199 + $0x98] sm:$0xff]
      %v229 = vld [vmem:[%s199 + $0xa0] sm:$0x3]
      %v230 = vld [vmem:[%s199 + $0xa8] sm:$0xff]
      %v231 = vld [vmem:[%s199 + $0xb0] sm:$0xff]
      %v232 = vld [vmem:[%s199 + $0xb8] sm:$0x3]
      %v233 = vld [vmem:[%s199 + $0xc0] sm:$0xff]
      %v234 = vld [vmem:[%s199 + $0xc8] sm:$0xff]
      %v235 = vld [vmem:[%s199 + $0xd0] sm:$0x3]
      %v236 = vld [vmem:[%s199 + $0xd8] sm:$0xff]
      %v237 = vld [vmem:[%s199 + $0xe0] sm:$0xff]
      %v238 = vld [vmem:[%s199 + $0xe8] sm:$0x3]
      %v239 = vld [vmem:[%s199 + $0xf0] sm:$0xff]
      %v240 = vld [vmem:[%s199 + $0xf8] sm:$0xff]
      %v241 = vld [vmem:[%s199 + $0x100] sm:$0x3]
      %v242 = vld [vmem:[%s199 + $0x108] sm:$0xff]
      %v243 = vld [vmem:[%s199 + $0x110] sm:$0xff]
      %v244 = vld [vmem:[%s199 + $0x118] sm:$0x3]
      %v245 = vld [vmem:[%s199 + $0x120] sm:$0xff]
      %v246 = vld [vmem:[%s199 + $0x128] sm:$0xff]
      %v247 = vld [vmem:[%s199 + $0x130] sm:$0x3]
      %v248 = vld [vmem:[%s199 + $0x138] sm:$0xff]
      %v249 = vld [vmem:[%s199 + $0x140] sm:$0xff]
      %v250 = vld [vmem:[%s199 + $0x148] sm:$0x3]
      %v251 = vld [vmem:[%s199 + $0x150] sm:$0xff]
      %v252 = vld [vmem:[%s199 + $0x158] sm:$0xff]
      %v253 = vld [vmem:[%s199 + $0x160] sm:$0x3]
      %v254 = vld [vmem:[%s199 + $0x168] sm:$0xff]
      %v255 = vld [vmem:[%s199 + $0x170] sm:$0xff]
      %v256 = vld [vmem:[%s199 + $0x178] sm:$0x3]
      %v257 = vld [vmem:[%s199 + $0x180] sm:$0xff]
      %v258 = vld [vmem:[%s199 + $0x188] sm:$0xff]
      %v259 = vld [vmem:[%s199 + $0x190] sm:$0x3]
      %v260 = vld [vmem:[%s199 + $0x198] sm:$0xff]
      %v261 = vld [vmem:[%s199 + $0x1a0] sm:$0xff]
      %v262 = vld [vmem:[%s199 + $0x1a8] sm:$0x3]
      %vm311 = vcmask 1046528
      %v312 = vrot.slane %v209, 1
      %v313 = vrot.slane %v210, 1
      %v314 = vsel %vm311, %v312, %v313
      %v315 = vrot.slane %v211, 1
      %v316 = vsel %vm311, %v313, %v315
      %v317 = vrot.slane %v212, 1
      %v318 = vrot.slane %v213, 1
      %v319 = vsel %vm311, %v317, %v318
      %v320 = vrot.slane %v214, 1
      %v321 = vsel %vm311, %v318, %v320
      %v322 = vrot.slane %v215, 1
      %v323 = vrot.slane %v216, 1
      %v324 = vsel %vm311, %v322, %v323
      %v325 = vrot.slane %v217, 1
      %v326 = vsel %vm311, %v323, %v325
      %v327 = vrot.slane %v218, 1
      %v328 = vrot.slane %v219, 1
      %v329 = vsel %vm311, %v327, %v328
      %v330 = vrot.slane %v220, 1
      %v331 = vsel %vm311, %v328, %v330
      %v332 = vrot.slane %v221, 1
      %v333 = vrot.slane %v222, 1
      %v334 = vsel %vm311, %v332, %v333
      %v335 = vrot.slane %v223, 1
      %v336 = vsel %vm311, %v333, %v335
      %v337 = vrot.slane %v224, 1
      %v338 = vrot.slane %v225, 1
      %v339 = vsel %vm311, %v337, %v338
      %v340 = vrot.slane %v226, 1
      %v341 = vsel %vm311, %v338, %v340
      %v342 = vrot.slane %v227, 1
      %v343 = vrot.slane %v228, 1
      %v344 = vsel %vm311, %v342, %v343
      %v345 = vrot.slane %v229, 1
      %v346 = vsel %vm311, %v343, %v345
      %v347 = vrot.slane %v230, 1
      %v348 = vrot.slane %v231, 1
      %v349 = vsel %vm311, %v347, %v348
      %v350 = vrot.slane %v232, 1
      %v351 = vsel %vm311, %v348, %v350
      %v352 = vrot.slane %v233, 1
      %v353 = vrot.slane %v234, 1
      %v354 = vsel %vm311, %v352, %v353
      %v355 = vrot.slane %v235, 1
      %v356 = vsel %vm311, %v353, %v355
      %v357 = vrot.slane %v236, 1
      %v358 = vrot.slane %v237, 1
      %v359 = vsel %vm311, %v357, %v358
      %v360 = vrot.slane %v238, 1
      %v361 = vsel %vm311, %v358, %v360
      %v362 = vrot.slane %v239, 1
      %v363 = vrot.slane %v240, 1
      %v364 = vsel %vm311, %v362, %v363
      %v365 = vrot.slane %v241, 1
      %v366 = vsel %vm311, %v363, %v365
      %v367 = vrot.slane %v242, 1
      %v368 = vrot.slane %v243, 1
      %v369 = vsel %vm311, %v367, %v368
      %v370 = vrot.slane %v244, 1
      %v371 = vsel %vm311, %v368, %v370
      %v372 = vrot.slane %v245, 1
      %v373 = vrot.slane %v246, 1
      %v374 = vsel %vm311, %v372, %v373
      %v375 = vrot.slane %v247, 1
      %v376 = vsel %vm311, %v373, %v375
      %v377 = vrot.slane %v248, 1
      %v378 = vrot.slane %v249, 1
      %v379 = vsel %vm311, %v377, %v378
      %v380 = vrot.slane %v250, 1
      %v381 = vsel %vm311, %v378, %v380
      %v382 = vrot.slane %v251, 1
      %v383 = vrot.slane %v252, 1
      %v384 = vsel %vm311, %v382, %v383
      %v385 = vrot.slane %v253, 1
      %v386 = vsel %vm311, %v383, %v385
      %v387 = vrot.slane %v254, 1
      %v388 = vrot.slane %v255, 1
      %v389 = vsel %vm311, %v387, %v388
      %v390 = vrot.slane %v256, 1
      %v391 = vsel %vm311, %v388, %v390
      %392 = vrot.lane.b32.xlu0 %v314, 4
      %v393 = vpop.permute.xlu0 %392
      %394 = vrot.lane.b32.xlu0 %v316, 4
      %v395 = vpop.permute.xlu0 %394
      %396 = vrot.lane.b32.xlu0 %v319, 4
      %v397 = vpop.permute.xlu0 %396
      %398 = vrot.lane.b32.xlu0 %v321, 4
      %v399 = vpop.permute.xlu0 %398
      %400 = vrot.lane.b32.xlu0 %v324, 4
      %v401 = vpop.permute.xlu0 %400
      %402 = vrot.lane.b32.xlu0 %v326, 4
      %v403 = vpop.permute.xlu0 %402
      %404 = vrot.lane.b32.xlu0 %v329, 4
      %v405 = vpop.permute.xlu0 %404
      %406 = vrot.lane.b32.xlu0 %v331, 4
      %v407 = vpop.permute.xlu0 %406
      %408 = vrot.lane.b32.xlu0 %v334, 4
      %v409 = vpop.permute.xlu0 %408
      %410 = vrot.lane.b32.xlu0 %v336, 4
      %v411 = vpop.permute.xlu0 %410
      %412 = vrot.lane.b32.xlu0 %v339, 4
      %v413 = vpop.permute.xlu0 %412
      %414 = vrot.lane.b32.xlu0 %v341, 4
      %v415 = vpop.permute.xlu0 %414
      %416 = vrot.lane.b32.xlu0 %v344, 4
      %v417 = vpop.permute.xlu0 %416
      %418 = vrot.lane.b32.xlu0 %v346, 4
      %v419 = vpop.permute.xlu0 %418
      %420 = vrot.lane.b32.xlu0 %v349, 4
      %v421 = vpop.permute.xlu0 %420
      %422 = vrot.lane.b32.xlu0 %v351, 4
      %v423 = vpop.permute.xlu0 %422
      %424 = vrot.lane.b32.xlu0 %v354, 4
      %v425 = vpop.permute.xlu0 %424
      %426 = vrot.lane.b32.xlu0 %v356, 4
      %v427 = vpop.permute.xlu0 %426
      %428 = vrot.lane.b32.xlu0 %v359, 4
      %v429 = vpop.permute.xlu0 %428
      %430 = vrot.lane.b32.xlu0 %v361, 4
      %v431 = vpop.permute.xlu0 %430
      %432 = vrot.lane.b32.xlu0 %v364, 4
      %v433 = vpop.permute.xlu0 %432
      %434 = vrot.lane.b32.xlu0 %v366, 4
      %v435 = vpop.permute.xlu0 %434
      %436 = vrot.lane.b32.xlu0 %v369, 4
      %v437 = vpop.permute.xlu0 %436
      %438 = vrot.lane.b32.xlu0 %v371, 4
      %v439 = vpop.permute.xlu0 %438
      %440 = vrot.lane.b32.xlu0 %v374, 4
      %v441 = vpop.permute.xlu0 %440
      %442 = vrot.lane.b32.xlu0 %v376, 4
      %v443 = vpop.permute.xlu0 %442
      %444 = vrot.lane.b32.xlu0 %v379, 4
      %v445 = vpop.permute.xlu0 %444
      %446 = vrot.lane.b32.xlu0 %v381, 4
      %v447 = vpop.permute.xlu0 %446
      %448 = vrot.lane.b32.xlu0 %v384, 4
      %v449 = vpop.permute.xlu0 %448
      %450 = vrot.lane.b32.xlu0 %v386, 4
      %v451 = vpop.permute.xlu0 %450
      %452 = vrot.lane.b32.xlu0 %v389, 4
      %v453 = vpop.permute.xlu0 %452
      %454 = vrot.lane.b32.xlu0 %v391, 4
      %v455 = vpop.permute.xlu0 %454
      %vm488 = vcmask 1045504
      %v489 = vrot.slane %v209, 2
      %v490 = vrot.slane %v210, 2
      %v491 = vsel %vm488, %v489, %v490
      %v492 = vrot.slane %v211, 2
      %v493 = vsel %vm488, %v490, %v492
      %v494 = vrot.slane %v212, 2
      %v495 = vrot.slane %v213, 2
      %v496 = vsel %vm488, %v494, %v495
      %v497 = vrot.slane %v214, 2
      %v498 = vsel %vm488, %v495, %v497
      %v499 = vrot.slane %v215, 2
      %v500 = vrot.slane %v216, 2
      %v501 = vsel %vm488, %v499, %v500
      %v502 = vrot.slane %v217, 2
      %v503 = vsel %vm488, %v500, %v502
      %v504 = vrot.slane %v218, 2
      %v505 = vrot.slane %v219, 2
      %v506 = vsel %vm488, %v504, %v505
      %v507 = vrot.slane %v220, 2
      %v508 = vsel %vm488, %v505, %v507
      %v509 = vrot.slane %v221, 2
      %v510 = vrot.slane %v222, 2
      %v511 = vsel %vm488, %v509, %v510
      %v512 = vrot.slane %v223, 2
      %v513 = vsel %vm488, %v510, %v512
      %v514 = vrot.slane %v224, 2
      %v515 = vrot.slane %v225, 2
      %v516 = vsel %vm488, %v514, %v515
      %v517 = vrot.slane %v226, 2
      %v518 = vsel %vm488, %v515, %v517
      %v519 = vrot.slane %v227, 2
      %v520 = vrot.slane %v228, 2
      %v521 = vsel %vm488, %v519, %v520
      %v522 = vrot.slane %v229, 2
      %v523 = vsel %vm488, %v520, %v522
      %v524 = vrot.slane %v230, 2
      %v525 = vrot.slane %v231, 2
      %v526 = vsel %vm488, %v524, %v525
      %v527 = vrot.slane %v232, 2
      %v528 = vsel %vm488, %v525, %v527
      %v529 = vrot.slane %v233, 2
      %v530 = vrot.slane %v234, 2
      %v531 = vsel %vm488, %v529, %v530
      %v532 = vrot.slane %v235, 2
      %v533 = vsel %vm488, %v530, %v532
      %v534 = vrot.slane %v236, 2
      %v535 = vrot.slane %v237, 2
      %v536 = vsel %vm488, %v534, %v535
      %v537 = vrot.slane %v238, 2
      %v538 = vsel %vm488, %v535, %v537
      %v539 = vrot.slane %v239, 2
      %v540 = vrot.slane %v240, 2
      %v541 = vsel %vm488, %v539, %v540
      %v542 = vrot.slane %v241, 2
      %v543 = vsel %vm488, %v540, %v542
      %v544 = vrot.slane %v242, 2
      %v545 = vrot.slane %v243, 2
      %v546 = vsel %vm488, %v544, %v545
      %v547 = vrot.slane %v244, 2
      %v548 = vsel %vm488, %v545, %v547
      %v549 = vrot.slane %v245, 2
      %v550 = vrot.slane %v246, 2
      %v551 = vsel %vm488, %v549, %v550
      %v552 = vrot.slane %v247, 2
      %v553 = vsel %vm488, %v550, %v552
      %v554 = vrot.slane %v248, 2
      %v555 = vrot.slane %v249, 2
      %v556 = vsel %vm488, %v554, %v555
      %v557 = vrot.slane %v250, 2
      %v558 = vsel %vm488, %v555, %v557
      %v559 = vrot.slane %v251, 2
      %v560 = vrot.slane %v252, 2
      %v561 = vsel %vm488, %v559, %v560
      %v562 = vrot.slane %v253, 2
      %v563 = vsel %vm488, %v560, %v562
      %v564 = vrot.slane %v254, 2
      %v565 = vrot.slane %v255, 2
      %v566 = vsel %vm488, %v564, %v565
      %v567 = vrot.slane %v256, 2
      %v568 = vsel %vm488, %v565, %v567
      %569 = vrot.lane.b32.xlu0 %v491, 8
      %v570 = vpop.permute.xlu0 %569
      %571 = vrot.lane.b32.xlu0 %v493, 8
      %v572 = vpop.permute.xlu0 %571
      %573 = vrot.lane.b32.xlu0 %v496, 8
      %v574 = vpop.permute.xlu0 %573
      %575 = vrot.lane.b32.xlu0 %v498, 8
      %v576 = vpop.permute.xlu0 %575
      %577 = vrot.lane.b32.xlu0 %v501, 8
      %v578 = vpop.permute.xlu0 %577
      %579 = vrot.lane.b32.xlu0 %v503, 8
      %v580 = vpop.permute.xlu0 %579
      %581 = vrot.lane.b32.xlu0 %v506, 8
      %v582 = vpop.permute.xlu0 %581
      %583 = vrot.lane.b32.xlu0 %v508, 8
      %v584 = vpop.permute.xlu0 %583
      %585 = vrot.lane.b32.xlu0 %v511, 8
      %v586 = vpop.permute.xlu0 %585
      %587 = vrot.lane.b32.xlu0 %v513, 8
      %v588 = vpop.permute.xlu0 %587
      %589 = vrot.lane.b32.xlu0 %v516, 8
      %v590 = vpop.permute.xlu0 %589
      %591 = vrot.lane.b32.xlu0 %v518, 8
      %v592 = vpop.permute.xlu0 %591
      %593 = vrot.lane.b32.xlu0 %v521, 8
      %v594 = vpop.permute.xlu0 %593
      %595 = vrot.lane.b32.xlu0 %v523, 8
      %v596 = vpop.permute.xlu0 %595
      %597 = vrot.lane.b32.xlu0 %v526, 8
      %v598 = vpop.permute.xlu0 %597
      %599 = vrot.lane.b32.xlu0 %v528, 8
      %v600 = vpop.permute.xlu0 %599
      %601 = vrot.lane.b32.xlu0 %v531, 8
      %v602 = vpop.permute.xlu0 %601
      %603 = vrot.lane.b32.xlu0 %v533, 8
      %v604 = vpop.permute.xlu0 %603
      %605 = vrot.lane.b32.xlu0 %v536, 8
      %v606 = vpop.permute.xlu0 %605
      %607 = vrot.lane.b32.xlu0 %v538, 8
      %v608 = vpop.permute.xlu0 %607
      %609 = vrot.lane.b32.xlu0 %v541, 8
      %v610 = vpop.permute.xlu0 %609
      %611 = vrot.lane.b32.xlu0 %v543, 8
      %v612 = vpop.permute.xlu0 %611
      %613 = vrot.lane.b32.xlu0 %v546, 8
      %v614 = vpop.permute.xlu0 %613
      %615 = vrot.lane.b32.xlu0 %v548, 8
      %v616 = vpop.permute.xlu0 %615
      %617 = vrot.lane.b32.xlu0 %v551, 8
      %v618 = vpop.permute.xlu0 %617
      %619 = vrot.lane.b32.xlu0 %v553, 8
      %v620 = vpop.permute.xlu0 %619
      %621 = vrot.lane.b32.xlu0 %v556, 8
      %v622 = vpop.permute.xlu0 %621
      %623 = vrot.lane.b32.xlu0 %v558, 8
      %v624 = vpop.permute.xlu0 %623
      %625 = vrot.lane.b32.xlu0 %v561, 8
      %v626 = vpop.permute.xlu0 %625
      %627 = vrot.lane.b32.xlu0 %v563, 8
      %v628 = vpop.permute.xlu0 %627
      %629 = vrot.lane.b32.xlu0 %v566, 8
      %v630 = vpop.permute.xlu0 %629
      %631 = vrot.lane.b32.xlu0 %v568, 8
      %v632 = vpop.permute.xlu0 %631
      %667 = vrot.lane.b32.xlu0 %v212, 12
      %v668 = vpop.permute.xlu0 %667
      %669 = vrot.lane.b32.xlu0 %v213, 12
      %v670 = vpop.permute.xlu0 %669
      %671 = vrot.lane.b32.xlu0 %v215, 12
      %v672 = vpop.permute.xlu0 %671
      %673 = vrot.lane.b32.xlu0 %v216, 12
      %v674 = vpop.permute.xlu0 %673
      %675 = vrot.lane.b32.xlu0 %v218, 12
      %v676 = vpop.permute.xlu0 %675
      %677 = vrot.lane.b32.xlu0 %v219, 12
      %v678 = vpop.permute.xlu0 %677
      %679 = vrot.lane.b32.xlu0 %v221, 12
      %v680 = vpop.permute.xlu0 %679
      %681 = vrot.lane.b32.xlu0 %v222, 12
      %v682 = vpop.permute.xlu0 %681
      %683 = vrot.lane.b32.xlu0 %v224, 12
      %v684 = vpop.permute.xlu0 %683
      %685 = vrot.lane.b32.xlu0 %v225, 12
      %v686 = vpop.permute.xlu0 %685
      %687 = vrot.lane.b32.xlu0 %v227, 12
      %v688 = vpop.permute.xlu0 %687
      %689 = vrot.lane.b32.xlu0 %v228, 12
      %v690 = vpop.permute.xlu0 %689
      %691 = vrot.lane.b32.xlu0 %v230, 12
      %v692 = vpop.permute.xlu0 %691
      %693 = vrot.lane.b32.xlu0 %v231, 12
      %v694 = vpop.permute.xlu0 %693
      %695 = vrot.lane.b32.xlu0 %v233, 12
      %v696 = vpop.permute.xlu0 %695
      %697 = vrot.lane.b32.xlu0 %v234, 12
      %v698 = vpop.permute.xlu0 %697
      %699 = vrot.lane.b32.xlu0 %v236, 12
      %v700 = vpop.permute.xlu0 %699
      %701 = vrot.lane.b32.xlu0 %v237, 12
      %v702 = vpop.permute.xlu0 %701
      %703 = vrot.lane.b32.xlu0 %v239, 12
      %v704 = vpop.permute.xlu0 %703
      %705 = vrot.lane.b32.xlu0 %v240, 12
      %v706 = vpop.permute.xlu0 %705
      %707 = vrot.lane.b32.xlu0 %v242, 12
      %v708 = vpop.permute.xlu0 %707
      %709 = vrot.lane.b32.xlu0 %v243, 12
      %v710 = vpop.permute.xlu0 %709
      %711 = vrot.lane.b32.xlu0 %v245, 12
      %v712 = vpop.permute.xlu0 %711
      %713 = vrot.lane.b32.xlu0 %v246, 12
      %v714 = vpop.permute.xlu0 %713
      %715 = vrot.lane.b32.xlu0 %v248, 12
      %v716 = vpop.permute.xlu0 %715
      %717 = vrot.lane.b32.xlu0 %v249, 12
      %v718 = vpop.permute.xlu0 %717
      %719 = vrot.lane.b32.xlu0 %v251, 12
      %v720 = vpop.permute.xlu0 %719
      %721 = vrot.lane.b32.xlu0 %v252, 12
      %v722 = vpop.permute.xlu0 %721
      %723 = vrot.lane.b32.xlu0 %v254, 12
      %v724 = vpop.permute.xlu0 %723
      %725 = vrot.lane.b32.xlu0 %v255, 12
      %v726 = vpop.permute.xlu0 %725
      %727 = vrot.lane.b32.xlu0 %v257, 12
      %v728 = vpop.permute.xlu0 %727
      %729 = vrot.lane.b32.xlu0 %v258, 12
      %v730 = vpop.permute.xlu0 %729
      %v764 = vrot.slane %v257, 1
      %v765 = vrot.slane %v258, 1
      %v766 = vsel %vm311, %v764, %v765
      %v767 = vrot.slane %v259, 1
      %v768 = vsel %vm311, %v765, %v767
      %769 = vrot.lane.b32.xlu0 %v319, 16
      %v770 = vpop.permute.xlu0 %769
      %771 = vrot.lane.b32.xlu0 %v321, 16
      %v772 = vpop.permute.xlu0 %771
      %773 = vrot.lane.b32.xlu0 %v324, 16
      %v774 = vpop.permute.xlu0 %773
      %775 = vrot.lane.b32.xlu0 %v326, 16
      %v776 = vpop.permute.xlu0 %775
      %777 = vrot.lane.b32.xlu0 %v329, 16
      %v778 = vpop.permute.xlu0 %777
      %779 = vrot.lane.b32.xlu0 %v331, 16
      %v780 = vpop.permute.xlu0 %779
      %781 = vrot.lane.b32.xlu0 %v334, 16
      %v782 = vpop.permute.xlu0 %781
      %783 = vrot.lane.b32.xlu0 %v336, 16
      %v784 = vpop.permute.xlu0 %783
      %785 = vrot.lane.b32.xlu0 %v339, 16
      %v786 = vpop.permute.xlu0 %785
      %787 = vrot.lane.b32.xlu0 %v341, 16
      %v788 = vpop.permute.xlu0 %787
      %789 = vrot.lane.b32.xlu0 %v344, 16
      %v790 = vpop.permute.xlu0 %789
      %791 = vrot.lane.b32.xlu0 %v346, 16
      %v792 = vpop.permute.xlu0 %791
      %793 = vrot.lane.b32.xlu0 %v349, 16
      %v794 = vpop.permute.xlu0 %793
      %795 = vrot.lane.b32.xlu0 %v351, 16
      %v796 = vpop.permute.xlu0 %795
      %797 = vrot.lane.b32.xlu0 %v354, 16
      %v798 = vpop.permute.xlu0 %797
      %799 = vrot.lane.b32.xlu0 %v356, 16
      %v800 = vpop.permute.xlu0 %799
      %801 = vrot.lane.b32.xlu0 %v359, 16
      %v802 = vpop.permute.xlu0 %801
      %803 = vrot.lane.b32.xlu0 %v361, 16
      %v804 = vpop.permute.xlu0 %803
      %805 = vrot.lane.b32.xlu0 %v364, 16
      %v806 = vpop.permute.xlu0 %805
      %807 = vrot.lane.b32.xlu0 %v366, 16
      %v808 = vpop.permute.xlu0 %807
      %809 = vrot.lane.b32.xlu0 %v369, 16
      %v810 = vpop.permute.xlu0 %809
      %811 = vrot.lane.b32.xlu0 %v371, 16
      %v812 = vpop.permute.xlu0 %811
      %813 = vrot.lane.b32.xlu0 %v374, 16
      %v814 = vpop.permute.xlu0 %813
      %815 = vrot.lane.b32.xlu0 %v376, 16
      %v816 = vpop.permute.xlu0 %815
      %817 = vrot.lane.b32.xlu0 %v379, 16
      %v818 = vpop.permute.xlu0 %817
      %819 = vrot.lane.b32.xlu0 %v381, 16
      %v820 = vpop.permute.xlu0 %819
      %821 = vrot.lane.b32.xlu0 %v384, 16
      %v822 = vpop.permute.xlu0 %821
      %823 = vrot.lane.b32.xlu0 %v386, 16
      %v824 = vpop.permute.xlu0 %823
      %825 = vrot.lane.b32.xlu0 %v389, 16
      %v826 = vpop.permute.xlu0 %825
      %827 = vrot.lane.b32.xlu0 %v391, 16
      %v828 = vpop.permute.xlu0 %827
      %829 = vrot.lane.b32.xlu0 %v766, 16
      %v830 = vpop.permute.xlu0 %829
      %831 = vrot.lane.b32.xlu0 %v768, 16
      %v832 = vpop.permute.xlu0 %831
      %v865 = vrot.slane %v257, 2
      %v866 = vrot.slane %v258, 2
      %v867 = vsel %vm488, %v865, %v866
      %v868 = vrot.slane %v259, 2
      %v869 = vsel %vm488, %v866, %v868
      %870 = vrot.lane.b32.xlu0 %v496, 20
      %v871 = vpop.permute.xlu0 %870
      %872 = vrot.lane.b32.xlu0 %v498, 20
      %v873 = vpop.permute.xlu0 %872
      %874 = vrot.lane.b32.xlu0 %v501, 20
      %v875 = vpop.permute.xlu0 %874
      %876 = vrot.lane.b32.xlu0 %v503, 20
      %v877 = vpop.permute.xlu0 %876
      %878 = vrot.lane.b32.xlu0 %v506, 20
      %v879 = vpop.permute.xlu0 %878
      %880 = vrot.lane.b32.xlu0 %v508, 20
      %v881 = vpop.permute.xlu0 %880
      %882 = vrot.lane.b32.xlu0 %v511, 20
      %v883 = vpop.permute.xlu0 %882
      %884 = vrot.lane.b32.xlu0 %v513, 20
      %v885 = vpop.permute.xlu0 %884
      %886 = vrot.lane.b32.xlu0 %v516, 20
      %v887 = vpop.permute.xlu0 %886
      %888 = vrot.lane.b32.xlu0 %v518, 20
      %v889 = vpop.permute.xlu0 %888
      %890 = vrot.lane.b32.xlu0 %v521, 20
      %v891 = vpop.permute.xlu0 %890
      %892 = vrot.lane.b32.xlu0 %v523, 20
      %v893 = vpop.permute.xlu0 %892
      %894 = vrot.lane.b32.xlu0 %v526, 20
      %v895 = vpop.permute.xlu0 %894
      %896 = vrot.lane.b32.xlu0 %v528, 20
      %v897 = vpop.permute.xlu0 %896
      %898 = vrot.lane.b32.xlu0 %v531, 20
      %v899 = vpop.permute.xlu0 %898
      %900 = vrot.lane.b32.xlu0 %v533, 20
      %v901 = vpop.permute.xlu0 %900
      %902 = vrot.lane.b32.xlu0 %v536, 20
      %v903 = vpop.permute.xlu0 %902
      %904 = vrot.lane.b32.xlu0 %v538, 20
      %v905 = vpop.permute.xlu0 %904
      %906 = vrot.lane.b32.xlu0 %v541, 20
      %v907 = vpop.permute.xlu0 %906
      %908 = vrot.lane.b32.xlu0 %v543, 20
      %v909 = vpop.permute.xlu0 %908
      %910 = vrot.lane.b32.xlu0 %v546, 20
      %v911 = vpop.permute.xlu0 %910
      %912 = vrot.lane.b32.xlu0 %v548, 20
      %v913 = vpop.permute.xlu0 %912
      %914 = vrot.lane.b32.xlu0 %v551, 20
      %v915 = vpop.permute.xlu0 %914
      %916 = vrot.lane.b32.xlu0 %v553, 20
      %v917 = vpop.permute.xlu0 %916
      %918 = vrot.lane.b32.xlu0 %v556, 20
      %v919 = vpop.permute.xlu0 %918
      %920 = vrot.lane.b32.xlu0 %v558, 20
      %v921 = vpop.permute.xlu0 %920
      %922 = vrot.lane.b32.xlu0 %v561, 20
      %v923 = vpop.permute.xlu0 %922
      %924 = vrot.lane.b32.xlu0 %v563, 20
      %v925 = vpop.permute.xlu0 %924
      %926 = vrot.lane.b32.xlu0 %v566, 20
      %v927 = vpop.permute.xlu0 %926
      %928 = vrot.lane.b32.xlu0 %v568, 20
      %v929 = vpop.permute.xlu0 %928
      %930 = vrot.lane.b32.xlu0 %v867, 20
      %v931 = vpop.permute.xlu0 %930
      %932 = vrot.lane.b32.xlu0 %v869, 20
      %v933 = vpop.permute.xlu0 %932
      %968 = vrot.lane.b32.xlu0 %v215, 24
      %v969 = vpop.permute.xlu0 %968
      %970 = vrot.lane.b32.xlu0 %v216, 24
      %v971 = vpop.permute.xlu0 %970
      %972 = vrot.lane.b32.xlu0 %v218, 24
      %v973 = vpop.permute.xlu0 %972
      %974 = vrot.lane.b32.xlu0 %v219, 24
      %v975 = vpop.permute.xlu0 %974
      %976 = vrot.lane.b32.xlu0 %v221, 24
      %v977 = vpop.permute.xlu0 %976
      %978 = vrot.lane.b32.xlu0 %v222, 24
      %v979 = vpop.permute.xlu0 %978
      %980 = vrot.lane.b32.xlu0 %v224, 24
      %v981 = vpop.permute.xlu0 %980
      %982 = vrot.lane.b32.xlu0 %v225, 24
      %v983 = vpop.permute.xlu0 %982
      %984 = vrot.lane.b32.xlu0 %v227, 24
      %v985 = vpop.permute.xlu0 %984
      %986 = vrot.lane.b32.xlu0 %v228, 24
      %v987 = vpop.permute.xlu0 %986
      %988 = vrot.lane.b32.xlu0 %v230, 24
      %v989 = vpop.permute.xlu0 %988
      %990 = vrot.lane.b32.xlu0 %v231, 24
      %v991 = vpop.permute.xlu0 %990
      %992 = vrot.lane.b32.xlu0 %v233, 24
      %v993 = vpop.permute.xlu0 %992
      %994 = vrot.lane.b32.xlu0 %v234, 24
      %v995 = vpop.permute.xlu0 %994
      %996 = vrot.lane.b32.xlu0 %v236, 24
      %v997 = vpop.permute.xlu0 %996
      %998 = vrot.lane.b32.xlu0 %v237, 24
      %v999 = vpop.permute.xlu0 %998
      %1000 = vrot.lane.b32.xlu0 %v239, 24
      %v1001 = vpop.permute.xlu0 %1000
      %1002 = vrot.lane.b32.xlu0 %v240, 24
      %v1003 = vpop.permute.xlu0 %1002
      %1004 = vrot.lane.b32.xlu0 %v242, 24
      %v1005 = vpop.permute.xlu0 %1004
      %1006 = vrot.lane.b32.xlu0 %v243, 24
      %v1007 = vpop.permute.xlu0 %1006
      %1008 = vrot.lane.b32.xlu0 %v245, 24
      %v1009 = vpop.permute.xlu0 %1008
      %1010 = vrot.lane.b32.xlu0 %v246, 24
      %v1011 = vpop.permute.xlu0 %1010
      %1012 = vrot.lane.b32.xlu0 %v248, 24
      %v1013 = vpop.permute.xlu0 %1012
      %1014 = vrot.lane.b32.xlu0 %v249, 24
      %v1015 = vpop.permute.xlu0 %1014
      %1016 = vrot.lane.b32.xlu0 %v251, 24
      %v1017 = vpop.permute.xlu0 %1016
      %1018 = vrot.lane.b32.xlu0 %v252, 24
      %v1019 = vpop.permute.xlu0 %1018
      %1020 = vrot.lane.b32.xlu0 %v254, 24
      %v1021 = vpop.permute.xlu0 %1020
      %1022 = vrot.lane.b32.xlu0 %v255, 24
      %v1023 = vpop.permute.xlu0 %1022
      %1024 = vrot.lane.b32.xlu0 %v257, 24
      %v1025 = vpop.permute.xlu0 %1024
      %1026 = vrot.lane.b32.xlu0 %v258, 24
      %v1027 = vpop.permute.xlu0 %1026
      %1028 = vrot.lane.b32.xlu0 %v260, 24
      %v1029 = vpop.permute.xlu0 %1028
      %1030 = vrot.lane.b32.xlu0 %v261, 24
      %v1031 = vpop.permute.xlu0 %1030
      %v1065 = vrot.slane %v260, 1
      %v1066 = vrot.slane %v261, 1
      %v1067 = vsel %vm311, %v1065, %v1066
      %v1068 = vrot.slane %v262, 1
      %v1069 = vsel %vm311, %v1066, %v1068
      %1070 = vrot.lane.b32.xlu0 %v324, 28
      %v1071 = vpop.permute.xlu0 %1070
      %1072 = vrot.lane.b32.xlu0 %v326, 28
      %v1073 = vpop.permute.xlu0 %1072
      %1074 = vrot.lane.b32.xlu0 %v329, 28
      %v1075 = vpop.permute.xlu0 %1074
      %1076 = vrot.lane.b32.xlu0 %v331, 28
      %v1077 = vpop.permute.xlu0 %1076
      %1078 = vrot.lane.b32.xlu0 %v334, 28
      %v1079 = vpop.permute.xlu0 %1078
      %1080 = vrot.lane.b32.xlu0 %v336, 28
      %v1081 = vpop.permute.xlu0 %1080
      %1082 = vrot.lane.b32.xlu0 %v339, 28
      %v1083 = vpop.permute.xlu0 %1082
      %1084 = vrot.lane.b32.xlu0 %v341, 28
      %v1085 = vpop.permute.xlu0 %1084
      %1086 = vrot.lane.b32.xlu0 %v344, 28
      %v1087 = vpop.permute.xlu0 %1086
      %1088 = vrot.lane.b32.xlu0 %v346, 28
      %v1089 = vpop.permute.xlu0 %1088
      %1090 = vrot.lane.b32.xlu0 %v349, 28
      %v1091 = vpop.permute.xlu0 %1090
      %1092 = vrot.lane.b32.xlu0 %v351, 28
      %v1093 = vpop.permute.xlu0 %1092
      %1094 = vrot.lane.b32.xlu0 %v354, 28
      %v1095 = vpop.permute.xlu0 %1094
      %1096 = vrot.lane.b32.xlu0 %v356, 28
      %v1097 = vpop.permute.xlu0 %1096
      %1098 = vrot.lane.b32.xlu0 %v359, 28
      %v1099 = vpop.permute.xlu0 %1098
      %1100 = vrot.lane.b32.xlu0 %v361, 28
      %v1101 = vpop.permute.xlu0 %1100
      %1102 = vrot.lane.b32.xlu0 %v364, 28
      %v1103 = vpop.permute.xlu0 %1102
      %1104 = vrot.lane.b32.xlu0 %v366, 28
      %v1105 = vpop.permute.xlu0 %1104
      %1106 = vrot.lane.b32.xlu0 %v369, 28
      %v1107 = vpop.permute.xlu0 %1106
      %1108 = vrot.lane.b32.xlu0 %v371, 28
      %v1109 = vpop.permute.xlu0 %1108
      %1110 = vrot.lane.b32.xlu0 %v374, 28
      %v1111 = vpop.permute.xlu0 %1110
      %1112 = vrot.lane.b32.xlu0 %v376, 28
      %v1113 = vpop.permute.xlu0 %1112
      %1114 = vrot.lane.b32.xlu0 %v379, 28
      %v1115 = vpop.permute.xlu0 %1114
      %1116 = vrot.lane.b32.xlu0 %v381, 28
      %v1117 = vpop.permute.xlu0 %1116
      %1118 = vrot.lane.b32.xlu0 %v384, 28
      %v1119 = vpop.permute.xlu0 %1118
      %1120 = vrot.lane.b32.xlu0 %v386, 28
      %v1121 = vpop.permute.xlu0 %1120
      %1122 = vrot.lane.b32.xlu0 %v389, 28
      %v1123 = vpop.permute.xlu0 %1122
      %1124 = vrot.lane.b32.xlu0 %v391, 28
      %v1125 = vpop.permute.xlu0 %1124
      %1126 = vrot.lane.b32.xlu0 %v766, 28
      %v1127 = vpop.permute.xlu0 %1126
      %1128 = vrot.lane.b32.xlu0 %v768, 28
      %v1129 = vpop.permute.xlu0 %1128
      %1130 = vrot.lane.b32.xlu0 %v1067, 28
      %v1131 = vpop.permute.xlu0 %1130
      %1132 = vrot.lane.b32.xlu0 %v1069, 28
      %v1133 = vpop.permute.xlu0 %1132
      %v1166 = vrot.slane %v260, 2
      %v1167 = vrot.slane %v261, 2
      %v1168 = vsel %vm488, %v1166, %v1167
      %v1169 = vrot.slane %v262, 2
      %v1170 = vsel %vm488, %v1167, %v1169
      %1171 = vrot.lane.b32.xlu0 %v501, 32
      %v1172 = vpop.permute.xlu0 %1171
      %1173 = vrot.lane.b32.xlu0 %v503, 32
      %v1174 = vpop.permute.xlu0 %1173
      %1175 = vrot.lane.b32.xlu0 %v506, 32
      %v1176 = vpop.permute.xlu0 %1175
      %1177 = vrot.lane.b32.xlu0 %v508, 32
      %v1178 = vpop.permute.xlu0 %1177
      %1179 = vrot.lane.b32.xlu0 %v511, 32
      %v1180 = vpop.permute.xlu0 %1179
      %1181 = vrot.lane.b32.xlu0 %v513, 32
      %v1182 = vpop.permute.xlu0 %1181
      %1183 = vrot.lane.b32.xlu0 %v516, 32
      %v1184 = vpop.permute.xlu0 %1183
      %1185 = vrot.lane.b32.xlu0 %v518, 32
      %v1186 = vpop.permute.xlu0 %1185
      %1187 = vrot.lane.b32.xlu0 %v521, 32
      %v1188 = vpop.permute.xlu0 %1187
      %1189 = vrot.lane.b32.xlu0 %v523, 32
      %v1190 = vpop.permute.xlu0 %1189
      %1191 = vrot.lane.b32.xlu0 %v526, 32
      %v1192 = vpop.permute.xlu0 %1191
      %1193 = vrot.lane.b32.xlu0 %v528, 32
      %v1194 = vpop.permute.xlu0 %1193
      %1195 = vrot.lane.b32.xlu0 %v531, 32
      %v1196 = vpop.permute.xlu0 %1195
      %1197 = vrot.lane.b32.xlu0 %v533, 32
      %v1198 = vpop.permute.xlu0 %1197
      %1199 = vrot.lane.b32.xlu0 %v536, 32
      %v1200 = vpop.permute.xlu0 %1199
      %1201 = vrot.lane.b32.xlu0 %v538, 32
      %v1202 = vpop.permute.xlu0 %1201
      %1203 = vrot.lane.b32.xlu0 %v541, 32
      %v1204 = vpop.permute.xlu0 %1203
      %1205 = vrot.lane.b32.xlu0 %v543, 32
      %v1206 = vpop.permute.xlu0 %1205
      %1207 = vrot.lane.b32.xlu0 %v546, 32
      %v1208 = vpop.permute.xlu0 %1207
      %1209 = vrot.lane.b32.xlu0 %v548, 32
      %v1210 = vpop.permute.xlu0 %1209
      %1211 = vrot.lane.b32.xlu0 %v551, 32
      %v1212 = vpop.permute.xlu0 %1211
      %1213 = vrot.lane.b32.xlu0 %v553, 32
      %v1214 = vpop.permute.xlu0 %1213
      %1215 = vrot.lane.b32.xlu0 %v556, 32
      %v1216 = vpop.permute.xlu0 %1215
      %1217 = vrot.lane.b32.xlu0 %v558, 32
      %v1218 = vpop.permute.xlu0 %1217
      %1219 = vrot.lane.b32.xlu0 %v561, 32
      %v1220 = vpop.permute.xlu0 %1219
      %1221 = vrot.lane.b32.xlu0 %v563, 32
      %v1222 = vpop.permute.xlu0 %1221
      %1223 = vrot.lane.b32.xlu0 %v566, 32
      %v1224 = vpop.permute.xlu0 %1223
      %1225 = vrot.lane.b32.xlu0 %v568, 32
      %v1226 = vpop.permute.xlu0 %1225
      %1227 = vrot.lane.b32.xlu0 %v867, 32
      %v1228 = vpop.permute.xlu0 %1227
      %1229 = vrot.lane.b32.xlu0 %v869, 32
      %v1230 = vpop.permute.xlu0 %1229
      %1231 = vrot.lane.b32.xlu0 %v1168, 32
      %v1232 = vpop.permute.xlu0 %1231
      %1233 = vrot.lane.b32.xlu0 %v1170, 32
      %v1234 = vpop.permute.xlu0 %1233
      %vm1267 = vcmask 31744
      %v1268 = vsel %vm1267, %v209, %v393
      %v1269 = vsel %vm1267, %v210, %v395
      %v1270 = vsel %vm1267, %v212, %v397
      %v1271 = vsel %vm1267, %v213, %v399
      %v1272 = vsel %vm1267, %v215, %v401
      %v1273 = vsel %vm1267, %v216, %v403
      %v1274 = vsel %vm1267, %v218, %v405
      %v1275 = vsel %vm1267, %v219, %v407
      %v1276 = vsel %vm1267, %v221, %v409
      %v1277 = vsel %vm1267, %v222, %v411
      %v1278 = vsel %vm1267, %v224, %v413
      %v1279 = vsel %vm1267, %v225, %v415
      %v1280 = vsel %vm1267, %v227, %v417
      %v1281 = vsel %vm1267, %v228, %v419
      %v1282 = vsel %vm1267, %v230, %v421
      %v1283 = vsel %vm1267, %v231, %v423
      %v1284 = vsel %vm1267, %v233, %v425
      %v1285 = vsel %vm1267, %v234, %v427
      %v1286 = vsel %vm1267, %v236, %v429
      %v1287 = vsel %vm1267, %v237, %v431
      %v1288 = vsel %vm1267, %v239, %v433
      %v1289 = vsel %vm1267, %v240, %v435
      %v1290 = vsel %vm1267, %v242, %v437
      %v1291 = vsel %vm1267, %v243, %v439
      %v1292 = vsel %vm1267, %v245, %v441
      %v1293 = vsel %vm1267, %v246, %v443
      %v1294 = vsel %vm1267, %v248, %v445
      %v1295 = vsel %vm1267, %v249, %v447
      %v1296 = vsel %vm1267, %v251, %v449
      %v1297 = vsel %vm1267, %v252, %v451
      %v1298 = vsel %vm1267, %v254, %v453
      %v1299 = vsel %vm1267, %v255, %v455
      %vm1300 = vcmask 64512
      %v1301 = vsel %vm1300, %v1268, %v570
      %v1302 = vsel %vm1300, %v1269, %v572
      %v1303 = vsel %vm1300, %v1270, %v574
      %v1304 = vsel %vm1300, %v1271, %v576
      %v1305 = vsel %vm1300, %v1272, %v578
      %v1306 = vsel %vm1300, %v1273, %v580
      %v1307 = vsel %vm1300, %v1274, %v582
      %v1308 = vsel %vm1300, %v1275, %v584
      %v1309 = vsel %vm1300, %v1276, %v586
      %v1310 = vsel %vm1300, %v1277, %v588
      %v1311 = vsel %vm1300, %v1278, %v590
      %v1312 = vsel %vm1300, %v1279, %v592
      %v1313 = vsel %vm1300, %v1280, %v594
      %v1314 = vsel %vm1300, %v1281, %v596
      %v1315 = vsel %vm1300, %v1282, %v598
      %v1316 = vsel %vm1300, %v1283, %v600
      %v1317 = vsel %vm1300, %v1284, %v602
      %v1318 = vsel %vm1300, %v1285, %v604
      %v1319 = vsel %vm1300, %v1286, %v606
      %v1320 = vsel %vm1300, %v1287, %v608
      %v1321 = vsel %vm1300, %v1288, %v610
      %v1322 = vsel %vm1300, %v1289, %v612
      %v1323 = vsel %vm1300, %v1290, %v614
      %v1324 = vsel %vm1300, %v1291, %v616
      %v1325 = vsel %vm1300, %v1292, %v618
      %v1326 = vsel %vm1300, %v1293, %v620
      %v1327 = vsel %vm1300, %v1294, %v622
      %v1328 = vsel %vm1300, %v1295, %v624
      %v1329 = vsel %vm1300, %v1296, %v626
      %v1330 = vsel %vm1300, %v1297, %v628
      %v1331 = vsel %vm1300, %v1298, %v630
      %v1332 = vsel %vm1300, %v1299, %v632
      %vm1333 = vcmask 97280
      %v1334 = vsel %vm1333, %v1301, %v668
      %v1335 = vsel %vm1333, %v1302, %v670
      %v1336 = vsel %vm1333, %v1303, %v672
      %v1337 = vsel %vm1333, %v1304, %v674
      %v1338 = vsel %vm1333, %v1305, %v676
      %v1339 = vsel %vm1333, %v1306, %v678
      %v1340 = vsel %vm1333, %v1307, %v680
      %v1341 = vsel %vm1333, %v1308, %v682
      %v1342 = vsel %vm1333, %v1309, %v684
      %v1343 = vsel %vm1333, %v1310, %v686
      %v1344 = vsel %vm1333, %v1311, %v688
      %v1345 = vsel %vm1333, %v1312, %v690
      %v1346 = vsel %vm1333, %v1313, %v692
      %v1347 = vsel %vm1333, %v1314, %v694
      %v1348 = vsel %vm1333, %v1315, %v696
      %v1349 = vsel %vm1333, %v1316, %v698
      %v1350 = vsel %vm1333, %v1317, %v700
      %v1351 = vsel %vm1333, %v1318, %v702
      %v1352 = vsel %vm1333, %v1319, %v704
      %v1353 = vsel %vm1333, %v1320, %v706
      %v1354 = vsel %vm1333, %v1321, %v708
      %v1355 = vsel %vm1333, %v1322, %v710
      %v1356 = vsel %vm1333, %v1323, %v712
      %v1357 = vsel %vm1333, %v1324, %v714
      %v1358 = vsel %vm1333, %v1325, %v716
      %v1359 = vsel %vm1333, %v1326, %v718
      %v1360 = vsel %vm1333, %v1327, %v720
      %v1361 = vsel %vm1333, %v1328, %v722
      %v1362 = vsel %vm1333, %v1329, %v724
      %v1363 = vsel %vm1333, %v1330, %v726
      %v1364 = vsel %vm1333, %v1331, %v728
      %v1365 = vsel %vm1333, %v1332, %v730
      %vm1366 = vcmask 130048
      %v1367 = vsel %vm1366, %v1334, %v770
      %v1368 = vsel %vm1366, %v1335, %v772
      %v1369 = vsel %vm1366, %v1336, %v774
      %v1370 = vsel %vm1366, %v1337, %v776
      %v1371 = vsel %vm1366, %v1338, %v778
      %v1372 = vsel %vm1366, %v1339, %v780
      %v1373 = vsel %vm1366, %v1340, %v782
      %v1374 = vsel %vm1366, %v1341, %v784
      %v1375 = vsel %vm1366, %v1342, %v786
      %v1376 = vsel %vm1366, %v1343, %v788
      %v1377 = vsel %vm1366, %v1344, %v790
      %v1378 = vsel %vm1366, %v1345, %v792
      %v1379 = vsel %vm1366, %v1346, %v794
      %v1380 = vsel %vm1366, %v1347, %v796
      %v1381 = vsel %vm1366, %v1348, %v798
      %v1382 = vsel %vm1366, %v1349, %v800
      %v1383 = vsel %vm1366, %v1350, %v802
      %v1384 = vsel %vm1366, %v1351, %v804
      %v1385 = vsel %vm1366, %v1352, %v806
      %v1386 = vsel %vm1366, %v1353, %v808
      %v1387 = vsel %vm1366, %v1354, %v810
      %v1388 = vsel %vm1366, %v1355, %v812
      %v1389 = vsel %vm1366, %v1356, %v814
      %v1390 = vsel %vm1366, %v1357, %v816
      %v1391 = vsel %vm1366, %v1358, %v818
      %v1392 = vsel %vm1366, %v1359, %v820
      %v1393 = vsel %vm1366, %v1360, %v822
      %v1394 = vsel %vm1366, %v1361, %v824
      %v1395 = vsel %vm1366, %v1362, %v826
      %v1396 = vsel %vm1366, %v1363, %v828
      %v1397 = vsel %vm1366, %v1364, %v830
      %v1398 = vsel %vm1366, %v1365, %v832
      %vm1399 = vcmask 162816
      %v1400 = vsel %vm1399, %v1367, %v871
      %v1401 = vsel %vm1399, %v1368, %v873
      %v1402 = vsel %vm1399, %v1369, %v875
      %v1403 = vsel %vm1399, %v1370, %v877
      %v1404 = vsel %vm1399, %v1371, %v879
      %v1405 = vsel %vm1399, %v1372, %v881
      %v1406 = vsel %vm1399, %v1373, %v883
      %v1407 = vsel %vm1399, %v1374, %v885
      %v1408 = vsel %vm1399, %v1375, %v887
      %v1409 = vsel %vm1399, %v1376, %v889
      %v1410 = vsel %vm1399, %v1377, %v891
      %v1411 = vsel %vm1399, %v1378, %v893
      %v1412 = vsel %vm1399, %v1379, %v895
      %v1413 = vsel %vm1399, %v1380, %v897
      %v1414 = vsel %vm1399, %v1381, %v899
      %v1415 = vsel %vm1399, %v1382, %v901
      %v1416 = vsel %vm1399, %v1383, %v903
      %v1417 = vsel %vm1399, %v1384, %v905
      %v1418 = vsel %vm1399, %v1385, %v907
      %v1419 = vsel %vm1399, %v1386, %v909
      %v1420 = vsel %vm1399, %v1387, %v911
      %v1421 = vsel %vm1399, %v1388, %v913
      %v1422 = vsel %vm1399, %v1389, %v915
      %v1423 = vsel %vm1399, %v1390, %v917
      %v1424 = vsel %vm1399, %v1391, %v919
      %v1425 = vsel %vm1399, %v1392, %v921
      %v1426 = vsel %vm1399, %v1393, %v923
      %v1427 = vsel %vm1399, %v1394, %v925
      %v1428 = vsel %vm1399, %v1395, %v927
      %v1429 = vsel %vm1399, %v1396, %v929
      %v1430 = vsel %vm1399, %v1397, %v931
      %v1431 = vsel %vm1399, %v1398, %v933
      %vm1432 = vcmask 195584
      %v1433 = vsel %vm1432, %v1400, %v969
      %v1434 = vsel %vm1432, %v1401, %v971
      %v1435 = vsel %vm1432, %v1402, %v973
      %v1436 = vsel %vm1432, %v1403, %v975
      %v1437 = vsel %vm1432, %v1404, %v977
      %v1438 = vsel %vm1432, %v1405, %v979
      %v1439 = vsel %vm1432, %v1406, %v981
      %v1440 = vsel %vm1432, %v1407, %v983
      %v1441 = vsel %vm1432, %v1408, %v985
      %v1442 = vsel %vm1432, %v1409, %v987
      %v1443 = vsel %vm1432, %v1410, %v989
      %v1444 = vsel %vm1432, %v1411, %v991
      %v1445 = vsel %vm1432, %v1412, %v993
      %v1446 = vsel %vm1432, %v1413, %v995
      %v1447 = vsel %vm1432, %v1414, %v997
      %v1448 = vsel %vm1432, %v1415, %v999
      %v1449 = vsel %vm1432, %v1416, %v1001
      %v1450 = vsel %vm1432, %v1417, %v1003
      %v1451 = vsel %vm1432, %v1418, %v1005
      %v1452 = vsel %vm1432, %v1419, %v1007
      %v1453 = vsel %vm1432, %v1420, %v1009
      %v1454 = vsel %vm1432, %v1421, %v1011
      %v1455 = vsel %vm1432, %v1422, %v1013
      %v1456 = vsel %vm1432, %v1423, %v1015
      %v1457 = vsel %vm1432, %v1424, %v1017
      %v1458 = vsel %vm1432, %v1425, %v1019
      %v1459 = vsel %vm1432, %v1426, %v1021
      %v1460 = vsel %vm1432, %v1427, %v1023
      %v1461 = vsel %vm1432, %v1428, %v1025
      %v1462 = vsel %vm1432, %v1429, %v1027
      %v1463 = vsel %vm1432, %v1430, %v1029
      %v1464 = vsel %vm1432, %v1431, %v1031
      %vm1465 = vcmask 228352
      %v1466 = vsel %vm1465, %v1433, %v1071
      %v1467 = vsel %vm1465, %v1434, %v1073
      %v1468 = vsel %vm1465, %v1435, %v1075
      %v1469 = vsel %vm1465, %v1436, %v1077
      %v1470 = vsel %vm1465, %v1437, %v1079
      %v1471 = vsel %vm1465, %v1438, %v1081
      %v1472 = vsel %vm1465, %v1439, %v1083
      %v1473 = vsel %vm1465, %v1440, %v1085
      %v1474 = vsel %vm1465, %v1441, %v1087
      %v1475 = vsel %vm1465, %v1442, %v1089
      %v1476 = vsel %vm1465, %v1443, %v1091
      %v1477 = vsel %vm1465, %v1444, %v1093
      %v1478 = vsel %vm1465, %v1445, %v1095
      %v1479 = vsel %vm1465, %v1446, %v1097
      %v1480 = vsel %vm1465, %v1447, %v1099
      %v1481 = vsel %vm1465, %v1448, %v1101
      %v1482 = vsel %vm1465, %v1449, %v1103
      %v1483 = vsel %vm1465, %v1450, %v1105
      %v1484 = vsel %vm1465, %v1451, %v1107
      %v1485 = vsel %vm1465, %v1452, %v1109
      %v1486 = vsel %vm1465, %v1453, %v1111
      %v1487 = vsel %vm1465, %v1454, %v1113
      %v1488 = vsel %vm1465, %v1455, %v1115
      %v1489 = vsel %vm1465, %v1456, %v1117
      %v1490 = vsel %vm1465, %v1457, %v1119
      %v1491 = vsel %vm1465, %v1458, %v1121
      %v1492 = vsel %vm1465, %v1459, %v1123
      %v1493 = vsel %vm1465, %v1460, %v1125
      %v1494 = vsel %vm1465, %v1461, %v1127
      %v1495 = vsel %vm1465, %v1462, %v1129
      %v1496 = vsel %vm1465, %v1463, %v1131
      %v1497 = vsel %vm1465, %v1464, %v1133
      %vm1498 = vcmask 261120
      %v1499 = vsel %vm1498, %v1466, %v1172
      %v1500 = vsel %vm1498, %v1467, %v1174
      %v1501 = vsel %vm1498, %v1468, %v1176
      %v1502 = vsel %vm1498, %v1469, %v1178
      %v1503 = vsel %vm1498, %v1470, %v1180
      %v1504 = vsel %vm1498, %v1471, %v1182
      %v1505 = vsel %vm1498, %v1472, %v1184
      %v1506 = vsel %vm1498, %v1473, %v1186
      %v1507 = vsel %vm1498, %v1474, %v1188
      %v1508 = vsel %vm1498, %v1475, %v1190
      %v1509 = vsel %vm1498, %v1476, %v1192
      %v1510 = vsel %vm1498, %v1477, %v1194
      %v1511 = vsel %vm1498, %v1478, %v1196
      %v1512 = vsel %vm1498, %v1479, %v1198
      %v1513 = vsel %vm1498, %v1480, %v1200
      %v1514 = vsel %vm1498, %v1481, %v1202
      %v1515 = vsel %vm1498, %v1482, %v1204
      %v1516 = vsel %vm1498, %v1483, %v1206
      %v1517 = vsel %vm1498, %v1484, %v1208
      %v1518 = vsel %vm1498, %v1485, %v1210
      %v1519 = vsel %vm1498, %v1486, %v1212
      %v1520 = vsel %vm1498, %v1487, %v1214
      %v1521 = vsel %vm1498, %v1488, %v1216
      %v1522 = vsel %vm1498, %v1489, %v1218
      %v1523 = vsel %vm1498, %v1490, %v1220
      %v1524 = vsel %vm1498, %v1491, %v1222
      %v1525 = vsel %vm1498, %v1492, %v1224
      %v1526 = vsel %vm1498, %v1493, %v1226
      %v1527 = vsel %vm1498, %v1494, %v1228
      %v1528 = vsel %vm1498, %v1495, %v1230
      %v1529 = vsel %vm1498, %v1496, %v1232
      %v1530 = vsel %vm1498, %v1497, %v1234
      %v1531 = vld [vmem:[%s1] sm:$0xff]
      %v1532 = vld [vmem:[%s2] sm:$0xff]
      %1534 = vset.pattern.permute.xlu0 0
      %1535 = vperm.xlu0 %1534, %v1532
      %v1536 = vpop.permute.xlu0 %1535
      %vm1538 = vcmask 293888
      %v1540 = vsel %vm1538, %v1531, 0
      %v1543 = vsel %vm1538, %v1499, 0
      %v1546 = vsel %vm1538, %v1500, 0
      %v1549 = vsel %vm1538, %v1501, 0
      %v1552 = vsel %vm1538, %v1502, 0
      %v1555 = vsel %vm1538, %v1503, 0
      %v1558 = vsel %vm1538, %v1504, 0
      %v1561 = vsel %vm1538, %v1505, 0
      %v1564 = vsel %vm1538, %v1506, 0
      %v1567 = vsel %vm1538, %v1507, 0
      %v1570 = vsel %vm1538, %v1508, 0
      %v1573 = vsel %vm1538, %v1509, 0
      %v1576 = vsel %vm1538, %v1510, 0
      %v1579 = vsel %vm1538, %v1511, 0
      %v1582 = vsel %vm1538, %v1512, 0
      %v1585 = vsel %vm1538, %v1513, 0
      %v1588 = vsel %vm1538, %v1514, 0
      %v1591 = vsel %vm1538, %v1515, 0
      %v1594 = vsel %vm1538, %v1516, 0
      %v1597 = vsel %vm1538, %v1517, 0
      %v1600 = vsel %vm1538, %v1518, 0
      %v1603 = vsel %vm1538, %v1519, 0
      %v1606 = vsel %vm1538, %v1520, 0
      %v1609 = vsel %vm1538, %v1521, 0
      %v1612 = vsel %vm1538, %v1522, 0
      %v1615 = vsel %vm1538, %v1523, 0
      %v1618 = vsel %vm1538, %v1524, 0
      %v1621 = vsel %vm1538, %v1525, 0
      %v1624 = vsel %vm1538, %v1526, 0
      %v1627 = vsel %vm1538, %v1527, 0
      %v1630 = vsel %vm1538, %v1528, 0
      %v1633 = vsel %vm1538, %v1529, 0
      %v1636 = vsel %vm1538, %v1530, 0
      %1638 = vmatpush.xpose.msra.mxu0 %v1588
      %1639 = vmatpush.xpose.msra.mxu0 %v1585
      %1640 = vmatpush.xpose.msra.mxu0 %v1582
      %1641 = vmatpush.xpose.msra.mxu0 %v1579
      %1642 = vmatpush.xpose.msra.mxu0 %v1576
      %1643 = vmatpush.xpose.msra.mxu0 %v1573
      %1644 = vmatpush.xpose.msra.mxu0 %v1570
      %1645 = vmatpush.xpose.msra.mxu0 %v1567
      %1646 = vmatpush.xpose.msra.mxu0 %v1564
      %1647 = vmatpush.xpose.msra.mxu0 %v1561
      %1648 = vmatpush.xpose.msra.mxu0 %v1558
      %1649 = vmatpush.xpose.msra.mxu0 %v1555
      %1650 = vmatpush.xpose.msra.mxu0 %v1552
      %1651 = vmatpush.xpose.msra.mxu0 %v1549
      %1652 = vmatpush.xpose.msra.mxu0 %v1546
      %1653 = vmatpush.xpose.msra.mxu0 %v1543
      %1654 = vmatmul.f32.gmra.mxu0 %v1540
      %v1655 = vpop.f32.mrf.mxu0
      %v1656 = vadd.f32 %v1536, %v1655
      %1657 = vdwg.mxu0
      %1658 = vmatpush.xpose.msra.mxu0 %v1636
      %1659 = vmatpush.xpose.msra.mxu0 %v1633
      %1660 = vmatpush.xpose.msra.mxu0 %v1630
      %1661 = vmatpush.xpose.msra.mxu0 %v1627
      %1662 = vmatpush.xpose.msra.mxu0 %v1624
      %1663 = vmatpush.xpose.msra.mxu0 %v1621
      %1664 = vmatpush.xpose.msra.mxu0 %v1618
      %1665 = vmatpush.xpose.msra.mxu0 %v1615
      %1666 = vmatpush.xpose.msra.mxu0 %v1612
      %1667 = vmatpush.xpose.msra.mxu0 %v1609
      %1668 = vmatpush.xpose.msra.mxu0 %v1606
      %1669 = vmatpush.xpose.msra.mxu0 %v1603
      %1670 = vmatpush.xpose.msra.mxu0 %v1600
      %1671 = vmatpush.xpose.msra.mxu0 %v1597
      %1672 = vmatpush.xpose.msra.mxu0 %v1594
      %1673 = vmatpush.xpose.msra.mxu0 %v1591
      %1674 = vmatmul.f32.gmra.mxu0 %v1540
      %v1675 = vpop.f32.mrf.mxu0
      %v1676 = vadd.f32 %v1536, %v1675
      %1677 = vdwg.mxu0
      %v1678 = vmax.f32 %v1656, 0.0
      %v1679 = vmax.f32 %v1676, 0.0
      %1680 = vst [vmem:[%s204] sm:$0xff] %v1678
      %1681 = vst [vmem:[%s204 + $0x8] sm:$0xff] %v1679
      %v1682 = vadd.f32 %v1678, %v1679
      %1683 = vadd.xlane.f32.xlu0 %v1682
      %v1684 = vpop.xlane.xlu0 %1683
      %v1685 = vmul.f32 %v1684, 0.00390625
      %vm1686 = vcmask 7168
      %1687 = vst.msk [vmem:[%s208] sm:$0xff] %vm1686, %v1685
      %p1688 = scmp.lt.s32.totalorder %s16, 1
      %s1689 = scalar_select %p1688, %s16, 1
      %s1690 = smul.addr %s1689, 2
      %s1691 = smul.addr %s1690, 8
      %s1692 = scalar_lea.vmem %s3, %s1691
      %p1693 = scmp.lt.s32.totalorder %s16, 1
      %s1694 = scalar_select %p1693, %s16, 1
      %s1695 = smul.addr %s1694, 8
      %s1696 = scalar_lea.vmem %s4, %s1695
      // Predicated region
      $region33: #{_lambda_.2} parent=31 // pred_check
        %p1697 = pneg %p102
      $region34: #{_lambda_.2} parent=31 // pred_check_branch
        %1699 = sbr.rel (%p1697) target = $region36
      $region35: #{_lambda_.2} parent=31 // pred_region
        _
      $region36: #{_lambda_.2} parent=31 // pred_fallthru
        _
      // Predicated region
      $region37: #{_lambda_.2} parent=31 // pred_check
        %p1700 = pneg %p128
      $region38: #{_lambda_.2} parent=31 // pred_check_branch
        %1702 = sbr.rel (%p1700) target = $region40
      $region39: #{_lambda_.2} parent=31 // pred_region
        _
      $region40: #{_lambda_.2} parent=31 // pred_fallthru
        _
    $region32: #{_lambda_.2} parent=5 // pred_fallthru
      _
    %p1703 = scmp.le.s32.totalorder 2, %s11
    // Predicated region
    $region41: #{_lambda_.2} parent=5 // pred_check
      %p1704 = pneg %p1703
    $region42: #{_lambda_.2} parent=5 // pred_check_branch
      %1706 = sbr.rel (%p1704) target = $region44
    $region43: #{_lambda_.2} parent=5 // pred_region
      %s1707 = ssub.s32 %s11, 2
      // Predicated region
      $region45: #{_lambda_.2} parent=43 // pred_check
        %p1708 = pneg %p108
      $region46: #{_lambda_.2} parent=43 // pred_check_branch
        %1710 = sbr.rel (%p1708) target = $region48
      $region47: #{_lambda_.2} parent=43 // pred_region
        %p1711 = scmp.lt.s32.totalorder %s17, 1
        %s1712 = scalar_select %p1711, %s17, 1
        %s1713 = smul.addr %s1712, 2
        %s1714 = smul.addr %s1713, 8
        %s1715 = scalar_lea.vmem %s3, %s1714
      $region48: #{_lambda_.2} parent=43 // pred_fallthru
        _
      // Predicated region
      $region49: #{_lambda_.2} parent=43 // pred_check
        %p1716 = pneg %p134
      $region50: #{_lambda_.2} parent=43 // pred_check_branch
        %1718 = sbr.rel (%p1716) target = $region52
      $region51: #{_lambda_.2} parent=43 // pred_region
        %p1719 = scmp.lt.s32.totalorder %s17, 1
        %s1720 = scalar_select %p1719, %s17, 1
        %s1721 = smul.addr %s1720, 8
        %s1722 = scalar_lea.vmem %s4, %s1721
      $region52: #{_lambda_.2} parent=43 // pred_fallthru
        _
    $region44: #{_lambda_.2} parent=5 // pred_fallthru
      _
  $region6: #{_lambda_.2} parent=0 // loop_footer
    %s15 = sadd.s32 1, %s11
  $region7: #{_lambda_.2} parent=0 // loop_footer_branch
    %10 = sbr.rel target = $region3
  $region8: #{_lambda_.2} parent=0 // loop_exit
    _

</llo_original>
